<compile_context>
chip_gen: v5e
topology: v5e:2x2
jax: 0.10.0
libtpu: 0.0.40
codegen_flags: <defaults>
</compile_context>

<pallas_src>
import functools
import math
from functools import partial

import jax
import jax.numpy as jnp
from jax import lax
from jax.experimental import pallas as pl
from jax.experimental.pallas import tpu as pltpu


# --------------------------- capability / limits ----------------------------

@functools.lru_cache(maxsize=None)
def _vmem_limit_bytes():
    # Scoped-VMEM defaults (16/32 MiB) are too small at production sizes; set an
    # explicit limit with ~1/8 headroom below physical capacity.
    try:
        cap = int(pltpu.get_tpu_info().vmem_capacity_bytes)
        return (cap * 7) // 8
    except Exception:
        return 56 * 1024 * 1024          # safe on v5e/v6e (128 MiB) and v7x (64 MiB)


@functools.lru_cache(maxsize=None)
def _single_buffer_ok():
    # Probe whether pipeline_mode=pl.Buffered(1) (single-buffered constant weight
    # blocks) lowers on this build; otherwise fall back to default double buffering.
    try:
        def k(x_ref, o_ref):
            o_ref[...] = x_ref[...]
        x = jnp.zeros((8, 128), jnp.float32)
        out = pl.pallas_call(
            k,
            out_shape=jax.ShapeDtypeStruct((8, 128), jnp.float32),
            grid=(1,),
            in_specs=[pl.BlockSpec((8, 128), lambda i: (0, 0),
                                   pipeline_mode=pl.Buffered(1))],
            out_specs=pl.BlockSpec((8, 128), lambda i: (0, 0)),
        )(x)
        jax.block_until_ready(out)
        return True
    except Exception:
        return False


# ----------------------------- Pallas kernels ------------------------------

def encoder_layer_kernel(*refs, nhead, seq_len, kv_block, add_pe, emb_scale):
    if add_pe:
        (x_ref, pe_ref, wqkv_ref, bqkv_ref, wo_ref, bo_ref,
         w1_ref, b1_ref, w2_ref, b2_ref,
         ln1w_ref, ln1b_ref, ln2w_ref, ln2b_ref, o_ref) = refs
    else:
        pe_ref = None
        (x_ref, wqkv_ref, bqkv_ref, wo_ref, bo_ref,
         w1_ref, b1_ref, w2_ref, b2_ref,
         ln1w_ref, ln1b_ref, ln2w_ref, ln2b_ref, o_ref) = refs

    rows, E = x_ref.shape                 # rows = Bb * S, row-major (b, s)
    S = seq_len
    Bb = rows // S
    dh = E // nhead
    HB = nhead * Bb
    scale = 1.0 / math.sqrt(dh)
    f32, bf16 = jnp.float32, jnp.bfloat16

    # ---- fused sqrt(E) embedding scale + positional encoding (layer 0 only) ----
    if add_pe:
        x3 = x_ref[...].astype(f32).reshape(Bb, S, E)
        x3 = x3 * emb_scale + pe_ref[...][None, :, :]       # broadcast, no concat temp
        xf = x3.reshape(rows, E)                            # f32 residual stream
    else:
        xf = x_ref[...].astype(f32)
    x_bf = xf.astype(bf16)                                  # bf16 MXU operand

    # ---- QKV projection (nn.MultiheadAttention in_proj) ----
    qkv = jnp.dot(x_bf, wqkv_ref[...],
                  preferred_element_type=f32) + bqkv_ref[...]       # (rows, 3E) f32
    q, k, v = qkv[:, :E], qkv[:, E:2 * E], qkv[:, 2 * E:]

    # TODO(synk): the per-head split uses nhead static lane slices; a single
    # (rows,E)->(Bb,S,nhead,dh) reshape + multi-batch-dim dot_general would avoid the
    # masked sub-lane copies, but that lane-splitting reshape does not lower reliably
    # in Mosaic today.  With lane-aligned dh (>=128) the slices are full-width anyway.
    def split_heads(t):                   # (rows, E) -> (nhead*Bb, S, dh), head-major
        hs = [t[:, h * dh:(h + 1) * dh].reshape(Bb, S, dh) for h in range(nhead)]
        return jnp.concatenate(hs, axis=0) if nhead > 1 else hs[0]

    qh = (split_heads(q) * scale).astype(bf16)
    kh = split_heads(k).astype(bf16)
    vh = split_heads(v).astype(bf16)

    # ---- causal attention: online softmax over KV tiles (flash-style) ----
    num_kv = S // kv_block
    m_i = jnp.full((HB, S, 1), -1e30, dtype=f32)
    l_i = jnp.zeros((HB, S, 1), dtype=f32)
    acc = jnp.zeros((HB, S, dh), dtype=f32)
    row_ids = lax.broadcasted_iota(jnp.int32, (S, kv_block), 0)     # hoisted
    col_base = lax.broadcasted_iota(jnp.int32, (S, kv_block), 1)
    for j in range(num_kv):
        kj = kh[:, j * kv_block:(j + 1) * kv_block, :]
        vj = vh[:, j * kv_block:(j + 1) * kv_block, :]
        s = lax.dot_general(qh, kj, (((2,), (2,)), ((0,), (0,))),
                            preferred_element_type=f32)             # (HB, S, Tk)
        keep = (col_base + j * kv_block) <= row_ids                 # causal select
        s = jnp.where(keep[None, :, :], s, -1e30)
        m_new = jnp.maximum(m_i, jnp.max(s, axis=-1, keepdims=True))
        alpha = jnp.exp(m_i - m_new)
        p = jnp.exp(s - m_new)
        l_i = alpha * l_i + jnp.sum(p, axis=-1, keepdims=True)
        acc = alpha * acc + lax.dot_general(p.astype(bf16), vj,
                                            (((2,), (1,)), ((0,), (0,))),
                                            preferred_element_type=f32)
        m_i = m_new
    # NOTE: approx reciprocal (EUP) has ~1e-3 rel. error -- fine for eval inference.
    ctx = acc * pl.reciprocal(l_i, approx=True)                     # (HB, S, dh)

    heads = [ctx[h * Bb:(h + 1) * Bb].reshape(rows, dh) for h in range(nhead)]
    attn = jnp.concatenate(heads, axis=-1) if nhead > 1 else heads[0]   # (rows, E)
    attn = jnp.dot(attn.astype(bf16), wo_ref[...],
                   preferred_element_type=f32) + bo_ref[...]

    # ---- residual + LayerNorm 1 (post-norm; dropout1 = identity), f32 stats ----
    y = xf + attn
    mu = jnp.mean(y, axis=-1, keepdims=True)
    var = jnp.mean(jnp.square(y - mu), axis=-1, keepdims=True)
    y = (y - mu) * lax.rsqrt(var + 1e-5) * ln1w_ref[...] + ln1b_ref[...]

    # ---- feed-forward (ReLU) ----
    h1 = jnp.dot(y.astype(bf16), w1_ref[...],
                 preferred_element_type=f32) + b1_ref[...]
    h1 = jnp.maximum(h1, 0.0)
    ff = jnp.dot(h1.astype(bf16), w2_ref[...],
                 preferred_element_type=f32) + b2_ref[...]

    # ---- residual + LayerNorm 2 (dropout2 = identity) ----
    z = y + ff
    mu2 = jnp.mean(z, axis=-1, keepdims=True)
    var2 = jnp.mean(jnp.square(z - mu2), axis=-1, keepdims=True)
    o_ref[...] = ((z - mu2) * lax.rsqrt(var2 + 1e-5)
                  * ln2w_ref[...] + ln2b_ref[...]).astype(o_ref.dtype)


def decoder_kernel(x_ref, w_ref, b_ref, o_ref):
    # (TM, E) bf16 @ (E, TN) bf16 -> f32 accum, + f32 bias; output tile is lane-dense.
    o_ref[...] = (jnp.dot(x_ref[...], w_ref[...],
                          preferred_element_type=jnp.float32) + b_ref[...])


# ----------------------------- wrappers ------------------------------------

def _run_encoder_layer(x_flat, pe, p, *, nhead, seq_len, add_pe, emb_scale,
                       batch_block=8, kv_block=512):
    N, E = x_flat.shape                        # N = B * S, bf16 slab
    B = N // seq_len
    nhid = p["w1"].shape[1]

    # Keep >= 2 grid steps when B allows it so both v7x TensorCores get work.
    Bb = max(1, min(batch_block, B // 2)) if B >= 2 else B
    rows = Bb * seq_len
    if rows % 8 != 0 and rows != N:            # keep the row block sublane-aligned
        Bb, rows = B, N
    grid = (pl.cdiv(B, Bb),)

    kvb = seq_len if seq_len <= kv_block else kv_block
    if seq_len % kvb != 0:                     # TODO(synk): ragged KV tail -> single tile
        kvb = seq_len

    single_buf = _single_buffer_ok()

    def const(shape):                          # constant-index block: DMA'd once
        if single_buf:
            return pl.BlockSpec(shape, lambda i: (0,) * len(shape),
                                pipeline_mode=pl.Buffered(1))
        return pl.BlockSpec(shape, lambda i: (0,) * len(shape))

    in_specs = [pl.BlockSpec((rows, E), lambda i: (i, 0))]   # activation row block
    operands = [x_flat]
    if add_pe:
        in_specs.append(const((seq_len, E)))                 # pe (S, E) f32
        operands.append(pe)
    in_specs += [
        const((E, 3 * E)), const((1, 3 * E)),                # in-proj (pre-transposed)
        const((E, E)),     const((1, E)),                    # out-proj
        const((E, nhid)),  const((1, nhid)),                 # linear1
        const((nhid, E)),  const((1, E)),                    # linear2
        const((1, E)), const((1, E)),                        # ln1 w/b
        const((1, E)), const((1, E)),                        # ln2 w/b
    ]
    operands += [p["wqkv"], p["bqkv"], p["wo"], p["bo"],
                 p["w1"], p["b1"], p["w2"], p["b2"],
                 p["ln1w"], p["ln1b"], p["ln2w"], p["ln2b"]]

    return pl.pallas_call(
        partial(encoder_layer_kernel, nhead=nhead, seq_len=seq_len,
                kv_block=kvb, add_pe=add_pe, emb_scale=emb_scale),
        out_shape=jax.ShapeDtypeStruct((N, E), jnp.bfloat16),
        grid=grid,
        in_specs=in_specs,
        out_specs=pl.BlockSpec((rows, E), lambda i: (i, 0)),
        compiler_params=pltpu.CompilerParams(
            dimension_semantics=("parallel",),
            vmem_limit_bytes=_vmem_limit_bytes()),
    )(*operands)


def _run_decoder(x_flat, dec_w, dec_b, *, row_block=256, vocab_block=512):
    N, E = x_flat.shape
    Vp = dec_w.shape[1]                        # vocab padded to a multiple of 128
    TM = min(row_block, N)
    if N >= 16:                                # >=2 row blocks keeps both v7x TCs busy
        TM = min(TM, ((N // 2 + 7) // 8) * 8)
    TN = min(vocab_block, Vp)                  # lane-dense vocab tile (multiple of 128)
    grid = (pl.cdiv(N, TM), pl.cdiv(Vp, TN))
    return pl.pallas_call(
        decoder_kernel,
        out_shape=jax.ShapeDtypeStruct((N, Vp), jnp.float32),
        grid=grid,
        in_specs=[pl.BlockSpec((TM, E), lambda i, j: (i, 0)),
                  pl.BlockSpec((E, TN), lambda i, j: (0, j)),
                  pl.BlockSpec((1, TN), lambda i, j: (0, j))],
        out_specs=pl.BlockSpec((TM, TN), lambda i, j: (i, j)),
        compiler_params=pltpu.CompilerParams(
            dimension_semantics=("parallel", "parallel"),
            vmem_limit_bytes=_vmem_limit_bytes()),
    )(x_flat, dec_w, dec_b)


def make_positional_encoding(seq_len, d_model):
    assert d_model % 2 == 0, "sinusoidal PE assumes even d_model"
    position = jnp.arange(seq_len, dtype=jnp.float32)[:, None]
    div_term = jnp.exp(jnp.arange(0, d_model, 2, dtype=jnp.float32)
                       * (-math.log(10000.0) / d_model))
    pe_sin = jnp.sin(position * div_term)                     # (S, E/2)
    pe_cos = jnp.cos(position * div_term)                     # (S, E/2)
    # interleave: pe[:, 0::2] = sin, pe[:, 1::2] = cos
    return jnp.stack([pe_sin, pe_cos], axis=-1).reshape(seq_len, d_model)


def transformer_forward(src_tokens, params, *, nhead):
    # src_tokens: (S, B) int32 token ids (PyTorch seq-first convention)
    S, B = src_tokens.shape
    emb = params["embedding"]
    ntoken = params["ntoken"]
    E = emb.shape[1]

    # TODO(synk): embedding gather stays in XLA (data-dependent lookup); a Pallas version
    # would need scalar-prefetch / DMA gather, overkill at this scale.
    x = jnp.take(emb, src_tokens.T, axis=0).reshape(B * S, E)   # bf16 slab, rows = (b, s)

    pe = make_positional_encoding(S, E)                         # (S, E) f32

    for li, layer_params in enumerate(params["layers"]):
        x = _run_encoder_layer(
            x, pe, layer_params, nhead=nhead, seq_len=S,
            add_pe=(li == 0), emb_scale=math.sqrt(E))           # scale + PE fused in layer 0

    logits = _run_decoder(x, params["dec_w"], params["dec_b"])  # (B*S, Vpad) f32
    logits = logits[:, :ntoken].reshape(B, S, ntoken)
    return jnp.transpose(logits, (1, 0, 2))                     # (S, B, ntoken)


# ----------------------------- parameter init ------------------------------

def init_params(key, ntoken, ninp, nhead, nhid, nlayers):
    assert ninp % nhead == 0
    vpad = ((ntoken + 127) // 128) * 128          # lane-dense decoder output width
    keys = iter(jax.random.split(key, 4 * nlayers + 4))

    def w(k, shape, scale=0.05):
        return (scale * jax.random.normal(k, shape)).astype(jnp.bfloat16)

    dec_w = jnp.zeros((ninp, vpad), jnp.float32).at[:, :ntoken].set(
        0.05 * jax.random.normal(next(keys), (ninp, ntoken))).astype(jnp.bfloat16)

    params = {
        "ntoken": ntoken,
        "embedding": w(next(keys), (ntoken, ninp)),
        "dec_w": dec_w,                            # pre-transposed: (E, vocab_pad), bf16
        "dec_b": jnp.zeros((1, vpad), jnp.float32),
        "layers": [],
    }
    for _ in range(nlayers):
        params["layers"].append({
            # big matrices bf16, pre-transposed (contraction dim first) -> no in-kernel .T;
            # biases / LayerNorm params stay f32.
            "wqkv": w(next(keys), (ninp, 3 * ninp)),
            "bqkv": jnp.zeros((1, 3 * ninp), jnp.float32),
            "wo": w(next(keys), (ninp, ninp)),
            "bo": jnp.zeros((1, ninp), jnp.float32),
            "w1": w(next(keys), (ninp, nhid)),
            "b1": jnp.zeros((1, nhid), jnp.float32),
            "w2": w(next(keys), (nhid, ninp)),
            "b2": jnp.zeros((1, ninp), jnp.float32),
            "ln1w": jnp.ones((1, ninp), jnp.float32),
            "ln1b": jnp.zeros((1, ninp), jnp.float32),
            "ln2w": jnp.ones((1, ninp), jnp.float32),
            "ln2b": jnp.zeros((1, ninp), jnp.float32),
        })
    return params


# ----------------------------- main -----------------------------------------

if __name__ == "__main__":
    NTOKEN, NINP, NHEAD, NHID, NLAYERS = 50, 32, 2, 64, 2
    S, B = 8, 4

    key = jax.random.PRNGKey(0)
    k_param, k_tok = jax.random.split(key)
    params = init_params(k_param, NTOKEN, NINP, NHEAD, NHID, NLAYERS)
    src = jax.random.randint(k_tok, (S, B), 0, NTOKEN, dtype=jnp.int32)

    out = transformer_forward(src, params, nhead=NHEAD)
    out = jax.block_until_ready(out)

    assert out.shape == (S, B, NTOKEN), out.shape
    assert bool(jnp.all(jnp.isfinite(out)))
    print("KERNEL_OK")
</pallas_src>

<mosaic_0001>
module attributes {stable_mosaic.version = 11 : i64} {
  func.func @k(%arg0: i32, %arg1: memref<8x128xf32, #tpu.memory_space<vmem>>, %arg2: memref<8x128xf32, #tpu.memory_space<vmem>>) attributes {dimension_semantics = [#tpu.dimension_semantics<arbitrary>], iteration_bounds = array<i64: 1>, scalar_prefetch = 0 : i64, scratch_operands = 0 : i64, tpu.core_type = #tpu.core_type<tc>, window_params = [{pipeline_mode = #tpu.pipeline_mode<synchronous>, transform_indices = @transform_0, window_bounds = array<i64: 8, 128>}, {pipeline_mode = #tpu.pipeline_mode<synchronous>, transform_indices = @transform_1, window_bounds = array<i64: 8, 128>}]} {
    %c0 = arith.constant 0 : index
    %c0_0 = arith.constant 0 : index
    %0 = vector.load %arg1[%c0, %c0_0] : memref<8x128xf32, #tpu.memory_space<vmem>>, vector<8x128xf32>
    %c0_1 = arith.constant 0 : index
    %c0_2 = arith.constant 0 : index
    %1 = vector.load %arg2[%c0_1, %c0_2] : memref<8x128xf32, #tpu.memory_space<vmem>>, vector<8x128xf32>
    tpu.vector_store %arg2[%c0_1, %c0_2], %0 {strides = array<i32>} : memref<8x128xf32, #tpu.memory_space<vmem>>, vector<8x128xf32>,
    return
  }
  func.func @transform_0(%arg0: i32) -> (i32, i32) {
    %c0_i32 = arith.constant 0 : i32
    %c0_i32_0 = arith.constant 0 : i32
    %c0_i32_1 = arith.constant 0 : i32
    return %c0_i32, %c0_i32_0 : i32, i32
  }
  func.func @transform_1(%arg0: i32) -> (i32, i32) {
    %c0_i32 = arith.constant 0 : i32
    %c0_i32_0 = arith.constant 0 : i32
    %c0_i32_1 = arith.constant 0 : i32
    return %c0_i32, %c0_i32_0 : i32, i32
  }
}

module attributes {stable_mosaic.version = 11 : i64} {
  func.func @encoder_layer_kernel(%arg0: i32, %arg1: memref<16x32xbf16, #tpu.memory_space<vmem>>, %arg2: memref<8x32xf32, #tpu.memory_space<vmem>>, %arg3: memref<32x96xbf16, #tpu.memory_space<vmem>>, %arg4: memref<1x96xf32, #tpu.memory_space<vmem>>, %arg5: memref<32x32xbf16, #tpu.memory_space<vmem>>, %arg6: memref<1x32xf32, #tpu.memory_space<vmem>>, %arg7: memref<32x64xbf16, #tpu.memory_space<vmem>>, %arg8: memref<1x64xf32, #tpu.memory_space<vmem>>, %arg9: memref<64x32xbf16, #tpu.memory_space<vmem>>, %arg10: memref<1x32xf32, #tpu.memory_space<vmem>>, %arg11: memref<1x32xf32, #tpu.memory_space<vmem>>, %arg12: memref<1x32xf32, #tpu.memory_space<vmem>>, %arg13: memref<1x32xf32, #tpu.memory_space<vmem>>, %arg14: memref<1x32xf32, #tpu.memory_space<vmem>>, %arg15: memref<16x32xbf16, #tpu.memory_space<vmem>>) attributes {dimension_semantics = [#tpu.dimension_semantics<parallel>], iteration_bounds = array<i64: 2>, scalar_prefetch = 0 : i64, scratch_operands = 0 : i64, tpu.core_type = #tpu.core_type<tc>, window_params = [{transform_indices = @transform_0, window_bounds = array<i64: 16, 32>}, {pipeline_mode = #tpu.pipeline_mode<synchronous>, transform_indices = @transform_1, window_bounds = array<i64: 8, 32>}, {pipeline_mode = #tpu.pipeline_mode<synchronous>, transform_indices = @transform_2, window_bounds = array<i64: 32, 96>}, {pipeline_mode = #tpu.pipeline_mode<synchronous>, transform_indices = @transform_3, window_bounds = array<i64: 1, 96>}, {pipeline_mode = #tpu.pipeline_mode<synchronous>, transform_indices = @transform_4, window_bounds = array<i64: 32, 32>}, {pipeline_mode = #tpu.pipeline_mode<synchronous>, transform_indices = @transform_5, window_bounds = array<i64: 1, 32>}, {pipeline_mode = #tpu.pipeline_mode<synchronous>, transform_indices = @transform_6, window_bounds = array<i64: 32, 64>}, {pipeline_mode = #tpu.pipeline_mode<synchronous>, transform_indices = @transform_7, window_bounds = array<i64: 1, 64>}, {pipeline_mode = #tpu.pipeline_mode<synchronous>, transform_indices = @transform_8, window_bounds = array<i64: 64, 32>}, {pipeline_mode = #tpu.pipeline_mode<synchronous>, transform_indices = @transform_9, window_bounds = array<i64: 1, 32>}, {pipeline_mode = #tpu.pipeline_mode<synchronous>, transform_indices = @transform_10, window_bounds = array<i64: 1, 32>}, {pipeline_mode = #tpu.pipeline_mode<synchronous>, transform_indices = @transform_11, window_bounds = array<i64: 1, 32>}, {pipeline_mode = #tpu.pipeline_mode<synchronous>, transform_indices = @transform_12, window_bounds = array<i64: 1, 32>}, {pipeline_mode = #tpu.pipeline_mode<synchronous>, transform_indices = @transform_13, window_bounds = array<i64: 1, 32>}, {transform_indices = @transform_14, window_bounds = array<i64: 16, 32>}]} {
    %c0 = arith.constant 0 : index
    %c0_0 = arith.constant 0 : index
    %0 = vector.load %arg1[%c0, %c0_0] : memref<16x32xbf16, #tpu.memory_space<vmem>>, vector<16x32xbf16>
    %1 = arith.extf %0 : vector<16x32xbf16> to vector<16x32xf32>
    %2 = vector.shape_cast %1 : vector<16x32xf32> to vector<2x8x32xf32>
    %cst = arith.constant 5.65685415 : f32
    %3 = vector.broadcast %cst : f32 to vector<2x8x32xf32>
    %4 = arith.mulf %2, %3 : vector<2x8x32xf32>
    %c0_1 = arith.constant 0 : index
    %c0_2 = arith.constant 0 : index
    %5 = vector.load %arg2[%c0_1, %c0_2] : memref<8x32xf32, #tpu.memory_space<vmem>>, vector<8x32xf32>
    %6 = vector.shape_cast %5 : vector<8x32xf32> to vector<1x8x32xf32>
    %7 = vector.broadcast %6 : vector<1x8x32xf32> to vector<2x8x32xf32>
    %8 = arith.addf %4, %7 : vector<2x8x32xf32>
    %9 = vector.shape_cast %8 : vector<2x8x32xf32> to vector<16x32xf32>
    %10 = arith.truncf %9 : vector<16x32xf32> to vector<16x32xbf16>
    %c0_3 = arith.constant 0 : index
    %c0_4 = arith.constant 0 : index
    %11 = vector.load %arg3[%c0_3, %c0_4] : memref<32x96xbf16, #tpu.memory_space<vmem>>, vector<32x96xbf16>
    %cst_5 = arith.constant dense<0.000000e+00> : vector<16x96xf32>
    %12 = tpu.matmul %10, %11, %cst_5 {dimension_numbers = #tpu.dot_dimension_numbers<[1], [0], [0], [1], [0, 0, 1, 1], [], []>} : vector<16x32xbf16>, vector<32x96xbf16>, vector<16x96xf32> -> vector<16x96xf32>
    %c0_6 = arith.constant 0 : index
    %c0_7 = arith.constant 0 : index
    %13 = vector.load %arg4[%c0_6, %c0_7] : memref<1x96xf32, #tpu.memory_space<vmem>>, vector<1x96xf32>
    %14 = vector.broadcast %13 : vector<1x96xf32> to vector<16x96xf32>
    %15 = arith.addf %12, %14 : vector<16x96xf32>
    %16 = vector.extract_strided_slice %15 {offsets = [0, 0], sizes = [16, 32], strides = [1, 1]} : vector<16x96xf32> to vector<16x32xf32>
    %17 = vector.extract_strided_slice %15 {offsets = [0, 32], sizes = [16, 32], strides = [1, 1]} : vector<16x96xf32> to vector<16x32xf32>
    %18 = vector.extract_strided_slice %15 {offsets = [0, 64], sizes = [16, 32], strides = [1, 1]} : vector<16x96xf32> to vector<16x32xf32>
    %19 = vector.extract_strided_slice %16 {offsets = [0, 0], sizes = [16, 16], strides = [1, 1]} : vector<16x32xf32> to vector<16x16xf32>
    %20 = vector.shape_cast %19 : vector<16x16xf32> to vector<2x8x16xf32>
    %21 = vector.extract_strided_slice %16 {offsets = [0, 16], sizes = [16, 16], strides = [1, 1]} : vector<16x32xf32> to vector<16x16xf32>
    %22 = vector.shape_cast %21 : vector<16x16xf32> to vector<2x8x16xf32>
    %23 = tpu.concatenate %20, %22 in 0 : vector<2x8x16xf32>, vector<2x8x16xf32> -> vector<4x8x16xf32>
    %cst_8 = arith.constant 2.500000e-01 : f32
    %24 = vector.broadcast %cst_8 : f32 to vector<4x8x16xf32>
    %25 = arith.mulf %23, %24 : vector<4x8x16xf32>
    %26 = arith.truncf %25 : vector<4x8x16xf32> to vector<4x8x16xbf16>
    %27 = vector.extract_strided_slice %17 {offsets = [0, 0], sizes = [16, 16], strides = [1, 1]} : vector<16x32xf32> to vector<16x16xf32>
    %28 = vector.shape_cast %27 : vector<16x16xf32> to vector<2x8x16xf32>
    %29 = vector.extract_strided_slice %17 {offsets = [0, 16], sizes = [16, 16], strides = [1, 1]} : vector<16x32xf32> to vector<16x16xf32>
    %30 = vector.shape_cast %29 : vector<16x16xf32> to vector<2x8x16xf32>
    %31 = tpu.concatenate %28, %30 in 0 : vector<2x8x16xf32>, vector<2x8x16xf32> -> vector<4x8x16xf32>
    %32 = arith.truncf %31 : vector<4x8x16xf32> to vector<4x8x16xbf16>
    %33 = vector.extract_strided_slice %18 {offsets = [0, 0], sizes = [16, 16], strides = [1, 1]} : vector<16x32xf32> to vector<16x16xf32>
    %34 = vector.shape_cast %33 : vector<16x16xf32> to vector<2x8x16xf32>
    %35 = vector.extract_strided_slice %18 {offsets = [0, 16], sizes = [16, 16], strides = [1, 1]} : vector<16x32xf32> to vector<16x16xf32>
    %36 = vector.shape_cast %35 : vector<16x16xf32> to vector<2x8x16xf32>
    %37 = tpu.concatenate %34, %36 in 0 : vector<2x8x16xf32>, vector<2x8x16xf32> -> vector<4x8x16xf32>
    %38 = arith.truncf %37 : vector<4x8x16xf32> to vector<4x8x16xbf16>
    %cst_9 = arith.constant -1.000000e+30 : f32
    %39 = vector.broadcast %cst_9 : f32 to vector<4x8x1xf32>
    %cst_10 = arith.constant 0.000000e+00 : f32
    %40 = vector.broadcast %cst_10 : f32 to vector<4x8x1xf32>
    %cst_11 = arith.constant 0.000000e+00 : f32
    %41 = vector.broadcast %cst_11 : f32 to vector<4x8x16xf32>
    %42 = tpu.iota {dimensions = array<i32: 0>} : vector<8x8xi32>
    %43 = tpu.iota {dimensions = array<i32: 1>} : vector<8x8xi32>
    %cst_12 = arith.constant dense<0.000000e+00> : vector<4x8x8xf32>
    %44 = tpu.matmul %26, %32, %cst_12 {dimension_numbers = #tpu.dot_dimension_numbers<[2], [2], [1], [1], [0, 0, 0, 1, 1, 1], [0], [0]>} : vector<4x8x16xbf16>, vector<4x8x16xbf16>, vector<4x8x8xf32> -> vector<4x8x8xf32>
    %c0_i32 = arith.constant 0 : i32
    %45 = vector.broadcast %c0_i32 : i32 to vector<8x8xi32>
    %46 = arith.addi %43, %45 : vector<8x8xi32>
    %47 = arith.cmpi sle, %46, %42 : vector<8x8xi32>
    %48 = vector.shape_cast %47 : vector<8x8xi1> to vector<1x8x8xi1>
    %cst_13 = arith.constant -1.000000e+30 : f32
    %49 = vector.shape_cast %48 : vector<1x8x8xi1> to vector<1x8x8xi1>
    %50 = vector.broadcast %49 : vector<1x8x8xi1> to vector<4x8x8xi1>
    %51 = vector.broadcast %cst_13 : f32 to vector<4x8x8xf32>
    %52 = arith.select %50, %44, %51 : vector<4x8x8xi1>, vector<4x8x8xf32>
    %cst_14 = arith.constant dense<0xFF800000> : vector<4x8xf32>
    %53 = vector.multi_reduction <maximumf>, %52, %cst_14 [2] : vector<4x8x8xf32> to vector<4x8xf32>
    %54 = vector.shape_cast %53 : vector<4x8xf32> to vector<4x8x1xf32>
    %55 = arith.maximumf %39, %54 : vector<4x8x1xf32>
    %56 = arith.subf %39, %55 : vector<4x8x1xf32>
    %57 = math.exp %56 : vector<4x8x1xf32>
    %58 = vector.broadcast %55 : vector<4x8x1xf32> to vector<4x8x8xf32>
    %59 = arith.subf %52, %58 : vector<4x8x8xf32>
    %60 = math.exp %59 : vector<4x8x8xf32>
    %61 = arith.mulf %57, %40 : vector<4x8x1xf32>
    %cst_15 = arith.constant dense<0.000000e+00> : vector<4x8xf32>
    %62 = vector.multi_reduction <add>, %60, %cst_15 [2] : vector<4x8x8xf32> to vector<4x8xf32>
    %63 = vector.shape_cast %62 : vector<4x8xf32> to vector<4x8x1xf32>
    %64 = arith.addf %61, %63 : vector<4x8x1xf32>
    %65 = vector.broadcast %57 : vector<4x8x1xf32> to vector<4x8x16xf32>
    %66 = arith.mulf %65, %41 : vector<4x8x16xf32>
    %67 = arith.truncf %60 : vector<4x8x8xf32> to vector<4x8x8xbf16>
    %cst_16 = arith.constant dense<0.000000e+00> : vector<4x8x16xf32>
    %68 = tpu.matmul %67, %38, %cst_16 {dimension_numbers = #tpu.dot_dimension_numbers<[2], [1], [1], [2], [0, 0, 0, 1, 1, 2], [0], [0]>} : vector<4x8x8xbf16>, vector<4x8x16xbf16>, vector<4x8x16xf32> -> vector<4x8x16xf32>
    %69 = arith.addf %66, %68 : vector<4x8x16xf32>
    %70 = tpu.reciprocal %64 {approx = true} : vector<4x8x1xf32> -> vector<4x8x1xf32>
    %71 = vector.broadcast %70 : vector<4x8x1xf32> to vector<4x8x16xf32>
    %72 = arith.mulf %69, %71 : vector<4x8x16xf32>
    %73 = vector.extract_strided_slice %72 {offsets = [0, 0, 0], sizes = [2, 8, 16], strides = [1, 1, 1]} : vector<4x8x16xf32> to vector<2x8x16xf32>
    %74 = vector.shape_cast %73 : vector<2x8x16xf32> to vector<16x16xf32>
    %75 = vector.extract_strided_slice %72 {offsets = [2, 0, 0], sizes = [2, 8, 16], strides = [1, 1, 1]} : vector<4x8x16xf32> to vector<2x8x16xf32>
    %76 = vector.shape_cast %75 : vector<2x8x16xf32> to vector<16x16xf32>
    %77 = tpu.concatenate %74, %76 in 1 : vector<16x16xf32>, vector<16x16xf32> -> vector<16x32xf32>
    %78 = arith.truncf %77 : vector<16x32xf32> to vector<16x32xbf16>
    %c0_17 = arith.constant 0 : index
    %c0_18 = arith.constant 0 : index
    %79 = vector.load %arg5[%c0_17, %c0_18] : memref<32x32xbf16, #tpu.memory_space<vmem>>, vector<32x32xbf16>
    %cst_19 = arith.constant dense<0.000000e+00> : vector<16x32xf32>
    %80 = tpu.matmul %78, %79, %cst_19 {dimension_numbers = #tpu.dot_dimension_numbers<[1], [0], [0], [1], [0, 0, 1, 1], [], []>} : vector<16x32xbf16>, vector<32x32xbf16>, vector<16x32xf32> -> vector<16x32xf32>
    %c0_20 = arith.constant 0 : index
    %c0_21 = arith.constant 0 : index
    %81 = vector.load %arg6[%c0_20, %c0_21] : memref<1x32xf32, #tpu.memory_space<vmem>>, vector<1x32xf32>
    %82 = vector.broadcast %81 : vector<1x32xf32> to vector<16x32xf32>
    %83 = arith.addf %80, %82 : vector<16x32xf32>
    %84 = arith.addf %9, %83 : vector<16x32xf32>
    %cst_22 = arith.constant dense<0.000000e+00> : vector<16xf32>
    %85 = vector.multi_reduction <add>, %84, %cst_22 [1] : vector<16x32xf32> to vector<16xf32>
    %86 = vector.shape_cast %85 : vector<16xf32> to vector<16x1xf32>
    %cst_23 = arith.constant 3.200000e+01 : f32
    %87 = vector.broadcast %cst_23 : f32 to vector<16x1xf32>
    %88 = arith.divf %86, %87 : vector<16x1xf32>
    %89 = vector.broadcast %88 : vector<16x1xf32> to vector<16x32xf32>
    %90 = arith.subf %84, %89 : vector<16x32xf32>
    %91 = arith.mulf %90, %90 : vector<16x32xf32>
    %cst_24 = arith.constant dense<0.000000e+00> : vector<16xf32>
    %92 = vector.multi_reduction <add>, %91, %cst_24 [1] : vector<16x32xf32> to vector<16xf32>
    %93 = vector.shape_cast %92 : vector<16xf32> to vector<16x1xf32>
    %cst_25 = arith.constant 3.200000e+01 : f32
    %94 = vector.broadcast %cst_25 : f32 to vector<16x1xf32>
    %95 = arith.divf %93, %94 : vector<16x1xf32>
    %96 = vector.broadcast %88 : vector<16x1xf32> to vector<16x32xf32>
    %97 = arith.subf %84, %96 : vector<16x32xf32>
    %cst_26 = arith.constant 9.99999974E-6 : f32
    %98 = vector.broadcast %cst_26 : f32 to vector<16x1xf32>
    %99 = arith.addf %95, %98 : vector<16x1xf32>
    %100 = math.rsqrt %99 : vector<16x1xf32>
    %101 = vector.broadcast %100 : vector<16x1xf32> to vector<16x32xf32>
    %102 = arith.mulf %97, %101 : vector<16x32xf32>
    %c0_27 = arith.constant 0 : index
    %c0_28 = arith.constant 0 : index
    %103 = vector.load %arg11[%c0_27, %c0_28] : memref<1x32xf32, #tpu.memory_space<vmem>>, vector<1x32xf32>
    %104 = vector.broadcast %103 : vector<1x32xf32> to vector<16x32xf32>
    %105 = arith.mulf %102, %104 : vector<16x32xf32>
    %c0_29 = arith.constant 0 : index
    %c0_30 = arith.constant 0 : index
    %106 = vector.load %arg12[%c0_29, %c0_30] : memref<1x32xf32, #tpu.memory_space<vmem>>, vector<1x32xf32>
    %107 = vector.broadcast %106 : vector<1x32xf32> to vector<16x32xf32>
    %108 = arith.addf %105, %107 : vector<16x32xf32>
    %109 = arith.truncf %108 : vector<16x32xf32> to vector<16x32xbf16>
    %c0_31 = arith.constant 0 : index
    %c0_32 = arith.constant 0 : index
    %110 = vector.load %arg7[%c0_31, %c0_32] : memref<32x64xbf16, #tpu.memory_space<vmem>>, vector<32x64xbf16>
    %cst_33 = arith.constant dense<0.000000e+00> : vector<16x64xf32>
    %111 = tpu.matmul %109, %110, %cst_33 {dimension_numbers = #tpu.dot_dimension_numbers<[1], [0], [0], [1], [0, 0, 1, 1], [], []>} : vector<16x32xbf16>, vector<32x64xbf16>, vector<16x64xf32> -> vector<16x64xf32>
    %c0_34 = arith.constant 0 : index
    %c0_35 = arith.constant 0 : index
    %112 = vector.load %arg8[%c0_34, %c0_35] : memref<1x64xf32, #tpu.memory_space<vmem>>, vector<1x64xf32>
    %113 = vector.broadcast %112 : vector<1x64xf32> to vector<16x64xf32>
    %114 = arith.addf %111, %113 : vector<16x64xf32>
    %cst_36 = arith.constant 0.000000e+00 : f32
    %115 = vector.broadcast %cst_36 : f32 to vector<16x64xf32>
    %116 = arith.maximumf %114, %115 : vector<16x64xf32>
    %117 = arith.truncf %116 : vector<16x64xf32> to vector<16x64xbf16>
    %c0_37 = arith.constant 0 : index
    %c0_38 = arith.constant 0 : index
    %118 = vector.load %arg9[%c0_37, %c0_38] : memref<64x32xbf16, #tpu.memory_space<vmem>>, vector<64x32xbf16>
    %cst_39 = arith.constant dense<0.000000e+00> : vector<16x32xf32>
    %119 = tpu.matmul %117, %118, %cst_39 {dimension_numbers = #tpu.dot_dimension_numbers<[1], [0], [0], [1], [0, 0, 1, 1], [], []>} : vector<16x64xbf16>, vector<64x32xbf16>, vector<16x32xf32> -> vector<16x32xf32>
    %c0_40 = arith.constant 0 : index
    %c0_41 = arith.constant 0 : index
    %120 = vector.load %arg10[%c0_40, %c0_41] : memref<1x32xf32, #tpu.memory_space<vmem>>, vector<1x32xf32>
    %121 = vector.broadcast %120 : vector<1x32xf32> to vector<16x32xf32>
    %122 = arith.addf %119, %121 : vector<16x32xf32>
    %123 = arith.addf %108, %122 : vector<16x32xf32>
    %cst_42 = arith.constant dense<0.000000e+00> : vector<16xf32>
    %124 = vector.multi_reduction <add>, %123, %cst_42 [1] : vector<16x32xf32> to vector<16xf32>
    %125 = vector.shape_cast %124 : vector<16xf32> to vector<16x1xf32>
    %cst_43 = arith.constant 3.200000e+01 : f32
    %126 = vector.broadcast %cst_43 : f32 to vector<16x1xf32>
    %127 = arith.divf %125, %126 : vector<16x1xf32>
    %128 = vector.broadcast %127 : vector<16x1xf32> to vector<16x32xf32>
    %129 = arith.subf %123, %128 : vector<16x32xf32>
    %130 = arith.mulf %129, %129 : vector<16x32xf32>
    %cst_44 = arith.constant dense<0.000000e+00> : vector<16xf32>
    %131 = vector.multi_reduction <add>, %130, %cst_44 [1] : vector<16x32xf32> to vector<16xf32>
    %132 = vector.shape_cast %131 : vector<16xf32> to vector<16x1xf32>
    %cst_45 = arith.constant 3.200000e+01 : f32
    %133 = vector.broadcast %cst_45 : f32 to vector<16x1xf32>
    %134 = arith.divf %132, %133 : vector<16x1xf32>
    %135 = vector.broadcast %127 : vector<16x1xf32> to vector<16x32xf32>
    %136 = arith.subf %123, %135 : vector<16x32xf32>
    %cst_46 = arith.constant 9.99999974E-6 : f32
    %137 = vector.broadcast %cst_46 : f32 to vector<16x1xf32>
    %138 = arith.addf %134, %137 : vector<16x1xf32>
    %139 = math.rsqrt %138 : vector<16x1xf32>
    %140 = vector.broadcast %139 : vector<16x1xf32> to vector<16x32xf32>
    %141 = arith.mulf %136, %140 : vector<16x32xf32>
    %c0_47 = arith.constant 0 : index
    %c0_48 = arith.constant 0 : index
    %142 = vector.load %arg13[%c0_47, %c0_48] : memref<1x32xf32, #tpu.memory_space<vmem>>, vector<1x32xf32>
    %143 = vector.broadcast %142 : vector<1x32xf32> to vector<16x32xf32>
    %144 = arith.mulf %141, %143 : vector<16x32xf32>
    %c0_49 = arith.constant 0 : index
    %c0_50 = arith.constant 0 : index
    %145 = vector.load %arg14[%c0_49, %c0_50] : memref<1x32xf32, #tpu.memory_space<vmem>>, vector<1x32xf32>
    %146 = vector.broadcast %145 : vector<1x32xf32> to vector<16x32xf32>
    %147 = arith.addf %144, %146 : vector<16x32xf32>
    %148 = arith.truncf %147 : vector<16x32xf32> to vector<16x32xbf16>
    %c0_51 = arith.constant 0 : index
    %c0_52 = arith.constant 0 : index
    %149 = vector.load %arg15[%c0_51, %c0_52] : memref<16x32xbf16, #tpu.memory_space<vmem>>, vector<16x32xbf16>
    tpu.vector_store %arg15[%c0_51, %c0_52], %148 {strides = array<i32>} : memref<16x32xbf16, #tpu.memory_space<vmem>>, vector<16x32xbf16>,
    return
  }
  func.func @transform_0(%arg0: i32) -> (i32, i32) {
    %c0_i32 = arith.constant 0 : i32
    %c0_i32_0 = arith.constant 0 : i32
    return %arg0, %c0_i32 : i32, i32
  }
  func.func @transform_1(%arg0: i32) -> (i32, i32) {
    %c0_i32 = arith.constant 0 : i32
    %c0_i32_0 = arith.constant 0 : i32
    %c0_i32_1 = arith.constant 0 : i32
    return %c0_i32, %c0_i32_0 : i32, i32
  }
  func.func @transform_2(%arg0: i32) -> (i32, i32) {
    %c0_i32 = arith.constant 0 : i32
    %c0_i32_0 = arith.constant 0 : i32
    %c0_i32_1 = arith.constant 0 : i32
    return %c0_i32, %c0_i32_0 : i32, i32
  }
  func.func @transform_3(%arg0: i32) -> (i32, i32) {
    %c0_i32 = arith.constant 0 : i32
    %c0_i32_0 = arith.constant 0 : i32
    %c0_i32_1 = arith.constant 0 : i32
    return %c0_i32, %c0_i32_0 : i32, i32
  }
  func.func @transform_4(%arg0: i32) -> (i32, i32) {
    %c0_i32 = arith.constant 0 : i32
    %c0_i32_0 = arith.constant 0 : i32
    %c0_i32_1 = arith.constant 0 : i32
    return %c0_i32, %c0_i32_0 : i32, i32
  }
  func.func @transform_5(%arg0: i32) -> (i32, i32) {
    %c0_i32 = arith.constant 0 : i32
    %c0_i32_0 = arith.constant 0 : i32
    %c0_i32_1 = arith.constant 0 : i32
    return %c0_i32, %c0_i32_0 : i32, i32
  }
  func.func @transform_6(%arg0: i32) -> (i32, i32) {
    %c0_i32 = arith.constant 0 : i32
    %c0_i32_0 = arith.constant 0 : i32
    %c0_i32_1 = arith.constant 0 : i32
    return %c0_i32, %c0_i32_0 : i32, i32
  }
  func.func @transform_7(%arg0: i32) -> (i32, i32) {
    %c0_i32 = arith.constant 0 : i32
    %c0_i32_0 = arith.constant 0 : i32
    %c0_i32_1 = arith.constant 0 : i32
    return %c0_i32, %c0_i32_0 : i32, i32
  }
  func.func @transform_8(%arg0: i32) -> (i32, i32) {
    %c0_i32 = arith.constant 0 : i32
    %c0_i32_0 = arith.constant 0 : i32
    %c0_i32_1 = arith.constant 0 : i32
    return %c0_i32, %c0_i32_0 : i32, i32
  }
  func.func @transform_9(%arg0: i32) -> (i32, i32) {
    %c0_i32 = arith.constant 0 : i32
    %c0_i32_0 = arith.constant 0 : i32
    %c0_i32_1 = arith.constant 0 : i32
    return %c0_i32, %c0_i32_0 : i32, i32
  }
  func.func @transform_10(%arg0: i32) -> (i32, i32) {
    %c0_i32 = arith.constant 0 : i32
    %c0_i32_0 = arith.constant 0 : i32
    %c0_i32_1 = arith.constant 0 : i32
    return %c0_i32, %c0_i32_0 : i32, i32
  }
  func.func @transform_11(%arg0: i32) -> (i32, i32) {
    %c0_i32 = arith.constant 0 : i32
    %c0_i32_0 = arith.constant 0 : i32
    %c0_i32_1 = arith.constant 0 : i32
    return %c0_i32, %c0_i32_0 : i32, i32
  }
  func.func @transform_12(%arg0: i32) -> (i32, i32) {
    %c0_i32 = arith.constant 0 : i32
    %c0_i32_0 = arith.constant 0 : i32
    %c0_i32_1 = arith.constant 0 : i32
    return %c0_i32, %c0_i32_0 : i32, i32
  }
  func.func @transform_13(%arg0: i32) -> (i32, i32) {
    %c0_i32 = arith.constant 0 : i32
    %c0_i32_0 = arith.constant 0 : i32
    %c0_i32_1 = arith.constant 0 : i32
    return %c0_i32, %c0_i32_0 : i32, i32
  }
  func.func @transform_14(%arg0: i32) -> (i32, i32) {
    %c0_i32 = arith.constant 0 : i32
    %c0_i32_0 = arith.constant 0 : i32
    return %arg0, %c0_i32 : i32, i32
  }
}

</mosaic_0001>

<llo_original>
// kernel: tpu_custom_call.1
$region0: #{tpu_custom_call.1}
  #allocation0 [shape = 'u32[]', space=smem, size = 0x4, offset = 0x4, fixed_abs, tag = 'smem constant byte address 0x4 - core index']
  #allocation1 [shape = 'u32[72,128]{1,0:T(1,128)}', space=vmem, size = 0x9000, scoped, tag = 'internal scratch']
  %s0 = inlined_call_operand.hbm [shape: f32[8,128], index: 0, kind: input, shape index: {}]
  %s1 = inlined_call_operand.hbm [shape: f32[8,128], index: 1, kind: output, shape index: {}]
  %s2 = sld [smem:[#allocation0]]
  $region18: #{tpu_custom_call.1} parent=0
    _
  %s4 = ssub.s32 1, %s2
  %s5 = scalar_select 0, %s4, %s2
  $region1: #{tpu_custom_call.1} parent=0
    #allocation2 [shape = 'u8[4096]{0}', space=vmem, size = 0x1000, scoped, tag = 'input window, operand 0, single buffered']
    #allocation3 [shape = 's32[1]{0}', space=sflag, size = 0x4, scoped, tag = 'scoped memory for tpu_custom_call.1']
    #allocation4 [shape = 's32[1]{0}', space=sflag, size = 0x4, scoped, tag = 'scoped memory for tpu_custom_call.1']
    #allocation5 [shape = 'u8[4096]{0}', space=vmem, size = 0x1000, scoped, tag = 'output window, operand 0, single buffered']
    %6 = vsyncpa [#allocation3], 0
    %7 = vsyncpa [#allocation4], 0
    // Predicated region
    $region2: #{tpu_custom_call.1} parent=1 // pred_check
      _
    $region3: #{tpu_custom_call.1} parent=1 // pred_check_branch
      %9 = sbr.rel (0) target = $region5
    $region4: #{tpu_custom_call.1} parent=1 // pred_region
      %11 = vsyncadd [#allocation3], 0
      %s13 = sshll.u32 %s0, 4
      %s14 = int_to_ptr.hbm [resolvable:$true] %s13
      %s15 = sshll.u32 [#allocation2], 4
      %s16 = int_to_ptr.vmem [resolvable:$true] %s15
      %18 = dma.hbm_to_vmem [thread:$0]  %s14, 128, %s16, [#allocation3]
    $region5: #{tpu_custom_call.1} parent=1 // pred_fallthru
      _
    // Predicated region
    $region6: #{tpu_custom_call.1} parent=1 // pred_check
      _
    $region7: #{tpu_custom_call.1} parent=1 // pred_check_branch
      %20 = sbr.rel (0) target = $region9
    $region8: #{tpu_custom_call.1} parent=1 // pred_region
      %22 = dma.done [#allocation3], 128
    $region9: #{tpu_custom_call.1} parent=1 // pred_fallthru
      _
    %v23 = vld [vmem:[#allocation2] sm:$0xff]
    %24 = vst [vmem:[#allocation5] sm:$0xff] %v23
    // Predicated region
    $region10: #{tpu_custom_call.1} parent=1 // pred_check
      _
    $region11: #{tpu_custom_call.1} parent=1 // pred_check_branch
      %26 = sbr.rel (0) target = $region13
    $region12: #{tpu_custom_call.1} parent=1 // pred_region
      %28 = vsyncadd [#allocation4], 0
      %s30 = sshll.u32 [#allocation5], 4
      %s31 = int_to_ptr.vmem [resolvable:$true] %s30
      %s32 = sshll.u32 %s1, 4
      %s33 = int_to_ptr.hbm [resolvable:$true] %s32
      %35 = dma.vmem_to_hbm [thread:$0]  %s31, 128, %s33, [#allocation4]
    $region13: #{tpu_custom_call.1} parent=1 // pred_fallthru
      _
    // Predicated region
    $region14: #{tpu_custom_call.1} parent=1 // pred_check
      _
    $region15: #{tpu_custom_call.1} parent=1 // pred_check_branch
      %37 = sbr.rel (0) target = $region17
    $region16: #{tpu_custom_call.1} parent=1 // pred_region
      %39 = dma.done [#allocation4], 128
    $region17: #{tpu_custom_call.1} parent=1 // pred_fallthru
      _
    %40 = vsyncpa [#allocation3], 1
    %41 = vsyncpa [#allocation4], 1

// kernel: tpu_custom_call.1
$region0: #{tpu_custom_call.1}
  #allocation0 [shape = 'u32[]', space=smem, size = 0x4, offset = 0x4, fixed_abs, tag = 'smem constant byte address 0x4 - core index']
  #allocation1 [shape = 'u32[72,128]{1,0:T(1,128)}', space=vmem, size = 0x9000, scoped, tag = 'internal scratch']
  %s0 = inlined_call_operand.vmem [shape: bf16[32,32], index: 0, kind: input, shape index: {}]
  %s1 = inlined_call_operand.hbm [shape: f32[8,32], index: 1, kind: input, shape index: {}]
  %s2 = inlined_call_operand.vmem [shape: bf16[32,96], index: 2, kind: input, shape index: {}]
  %s3 = inlined_call_operand.vmem [shape: f32[1,96], index: 3, kind: input, shape index: {}]
  %s4 = inlined_call_operand.vmem [shape: bf16[32,32], index: 4, kind: input, shape index: {}]
  %s5 = inlined_call_operand.vmem [shape: f32[1,32], index: 5, kind: input, shape index: {}]
  %s6 = inlined_call_operand.hbm [shape: bf16[32,64], index: 6, kind: input, shape index: {}]
  %s7 = inlined_call_operand.vmem [shape: f32[1,64], index: 7, kind: input, shape index: {}]
  %s8 = inlined_call_operand.vmem [shape: bf16[64,32], index: 8, kind: input, shape index: {}]
  %s9 = inlined_call_operand.vmem [shape: f32[1,32], index: 9, kind: input, shape index: {}]
  %s10 = inlined_call_operand.vmem [shape: f32[1,32], index: 10, kind: input, shape index: {}]
  %s11 = inlined_call_operand.vmem [shape: f32[1,32], index: 11, kind: input, shape index: {}]
  %s12 = inlined_call_operand.vmem [shape: f32[1,32], index: 12, kind: input, shape index: {}]
  %s13 = inlined_call_operand.vmem [shape: f32[1,32], index: 13, kind: input, shape index: {}]
  %s14 = inlined_call_operand.hbm [shape: bf16[32,32], index: 14, kind: output, shape index: {}]
  %s15 = sld [smem:[#allocation0]]
  $region97: #{tpu_custom_call.1} parent=0
    _
  %s17 = ssub.s32 1, %s15
  %s18 = scalar_select 0, %s17, %s15
  $region1: #{tpu_custom_call.1} parent=0
    #allocation2 [shape = 'u8[4096]{0}', space=vmem, size = 0x1000, scoped, tag = 'input window, operand 1, single buffered']
    #allocation3 [shape = 's32[2]{0}', space=sflag, size = 0x8, scoped, tag = 'scoped memory for tpu_custom_call.1']
    #allocation4 [shape = 's32[2]{0}', space=sflag, size = 0x8, scoped, tag = 'scoped memory for tpu_custom_call.1']
    #allocation5 [shape = 'u8[8192]{0}', space=vmem, size = 0x2000, scoped, tag = 'input window, operand 6, single buffered']
    #allocation6 [shape = 's32[1]{0}', space=sflag, size = 0x4, scoped, tag = 'scoped memory for tpu_custom_call.1']
    #allocation7 [shape = 'u8[8192]{0}', space=vmem, size = 0x2000, scoped, tag = 'output window, operand 0']
    %19 = vsyncpa [#allocation3], 0
    %20 = vsyncpa [#allocation6], 0
    %21 = vsyncpa [#allocation4], 0
    %s22 = scalar_lea.sflag [#allocation4], 1
    %23 = vsyncpa %s22, 0
    loop: start=0, step=1, limit=4
    $region2: #{tpu_custom_call.1} parent=1 // loop_pre_header
      _
    $region3: #{tpu_custom_call.1} parent=1 // loop_header
      %s25 = sphi 0, %s29
      %p26 = scmp.ge.s32.totalorder %s25, 4
      %s35 = sphi 0, %s37
      %s38 = sphi 0, %s35
      %s39 = sphi 0, %s38
      %s55 = sphi 0, %s39
      %s59 = sphi 0, %s59
      %s61 = sphi 0, %s59
      %s62 = sphi 0, %s61
      %s76 = sphi 0, %s62
      %s80 = sphi 0, %s80
      %s82 = sphi 0, %s80
      %s83 = sphi 0, %s82
      %s97 = sphi 0, %s83
      %s101 = sphi 0, %s101
      %s103 = sphi 0, %s101
      %s104 = sphi 0, %s103
      %s118 = sphi 0, %s104
      %s122 = sphi 0, %s122
      %s124 = sphi 0, %s122
      %s125 = sphi 0, %s124
      %s139 = sphi 0, %s125
      %s143 = sphi 0, %s143
      %s145 = sphi 0, %s143
      %s146 = sphi 0, %s145
      %s160 = sphi 0, %s146
      %s164 = sphi 0, %s164
      %s166 = sphi 0, %s164
      %s167 = sphi 0, %s166
      %s181 = sphi 0, %s167
      %s185 = sphi 0, %s185
      %s187 = sphi 0, %s185
      %s188 = sphi 0, %s187
      %s202 = sphi 0, %s188
      %s206 = sphi 0, %s206
      %s208 = sphi 0, %s206
      %s209 = sphi 0, %s208
      %s223 = sphi 0, %s209
      %s227 = sphi 0, %s227
      %s229 = sphi 0, %s227
      %s230 = sphi 0, %s229
      %s244 = sphi 0, %s230
      %s248 = sphi 0, %s248
      %s250 = sphi 0, %s248
      %s251 = sphi 0, %s250
      %s265 = sphi 0, %s251
      %s269 = sphi 0, %s269
      %s271 = sphi 0, %s269
      %s272 = sphi 0, %s271
      %s286 = sphi 0, %s272
      %s290 = sphi 0, %s290
      %s292 = sphi 0, %s290
      %s293 = sphi 0, %s292
      %s307 = sphi 0, %s293
      %s311 = sphi 0, %s311
      %s313 = sphi 0, %s311
      %s314 = sphi 0, %s313
      %s328 = sphi 0, %s314
      %s334 = sphi 0, %s336
      %s337 = sphi 0, %s334
      %s338 = sphi 0, %s337
      %s354 = sphi 0, %s338
    $region4: #{tpu_custom_call.1} parent=1 // loop_header_branch
      %28 = sbr.rel (%p26) target = $region8
    $region5: #{tpu_custom_call.1} parent=1 // loop_body
      %s30 = ssub.s32 %s25, 1
      %s31 = ssub.s32 %s25, 2
      %s32 = sadd.s32 %s25, 1
      %s33 = ssub.s32 %s25, %s32
      %p34 = scmp.eq.s32.totalorder %s33, 0
      %s36 = sadd.s32 %s35, 1
      %s37 = scalar_select %p34, %s35, %s36
      %p40 = pneg %p34
      %p41 = scmp.eq.s32.totalorder %s25, 1
      %p42 = por %p40, %p41
      %p43 = scmp.ne.s32.totalorder %s35, %s38
      %p44 = scmp.eq.s32.totalorder %s25, 0
      %p45 = por %p43, %p44
      %p46 = scmp.ne.s32.totalorder %s35, %s38
      %p47 = scmp.eq.s32.totalorder %s30, 1
      %p48 = por %p46, %p47
      %p49 = scmp.ne.s32.totalorder %s38, %s39
      %p50 = scmp.eq.s32.totalorder %s30, 0
      %p51 = por %p49, %p50
      %p52 = scmp.ne.s32.totalorder %s38, %s39
      %p53 = scmp.eq.s32.totalorder %s31, 1
      %p54 = por %p52, %p53
      %p56 = scmp.ne.s32.totalorder %s39, %s55
      %p57 = scmp.eq.s32.totalorder %s31, 0
      %p58 = por %p56, %p57
      %s60 = sadd.s32 %s59, 1
      %p63 = scmp.eq.s32.totalorder %s25, 1
      %p64 = scmp.ne.s32.totalorder %s59, %s61
      %p65 = scmp.eq.s32.totalorder %s25, 0
      %p66 = por %p64, %p65
      %p67 = scmp.ne.s32.totalorder %s59, %s61
      %p68 = scmp.eq.s32.totalorder %s30, 1
      %p69 = por %p67, %p68
      %p70 = scmp.ne.s32.totalorder %s61, %s62
      %p71 = scmp.eq.s32.totalorder %s30, 0
      %p72 = por %p70, %p71
      %p73 = scmp.ne.s32.totalorder %s61, %s62
      %p74 = scmp.eq.s32.totalorder %s31, 1
      %p75 = por %p73, %p74
      %p77 = scmp.ne.s32.totalorder %s62, %s76
      %p78 = scmp.eq.s32.totalorder %s31, 0
      %p79 = por %p77, %p78
      %s81 = sadd.s32 %s80, 1
      %p84 = scmp.eq.s32.totalorder %s25, 1
      %p85 = scmp.ne.s32.totalorder %s80, %s82
      %p86 = scmp.eq.s32.totalorder %s25, 0
      %p87 = por %p85, %p86
      %p88 = scmp.ne.s32.totalorder %s80, %s82
      %p89 = scmp.eq.s32.totalorder %s30, 1
      %p90 = por %p88, %p89
      %p91 = scmp.ne.s32.totalorder %s82, %s83
      %p92 = scmp.eq.s32.totalorder %s30, 0
      %p93 = por %p91, %p92
      %p94 = scmp.ne.s32.totalorder %s82, %s83
      %p95 = scmp.eq.s32.totalorder %s31, 1
      %p96 = por %p94, %p95
      %p98 = scmp.ne.s32.totalorder %s83, %s97
      %p99 = scmp.eq.s32.totalorder %s31, 0
      %p100 = por %p98, %p99
      %s102 = sadd.s32 %s101, 1
      %p105 = scmp.eq.s32.totalorder %s25, 1
      %p106 = scmp.ne.s32.totalorder %s101, %s103
      %p107 = scmp.eq.s32.totalorder %s25, 0
      %p108 = por %p106, %p107
      %p109 = scmp.ne.s32.totalorder %s101, %s103
      %p110 = scmp.eq.s32.totalorder %s30, 1
      %p111 = por %p109, %p110
      %p112 = scmp.ne.s32.totalorder %s103, %s104
      %p113 = scmp.eq.s32.totalorder %s30, 0
      %p114 = por %p112, %p113
      %p115 = scmp.ne.s32.totalorder %s103, %s104
      %p116 = scmp.eq.s32.totalorder %s31, 1
      %p117 = por %p115, %p116
      %p119 = scmp.ne.s32.totalorder %s104, %s118
      %p120 = scmp.eq.s32.totalorder %s31, 0
      %p121 = por %p119, %p120
      %s123 = sadd.s32 %s122, 1
      %p126 = scmp.eq.s32.totalorder %s25, 1
      %p127 = scmp.ne.s32.totalorder %s122, %s124
      %p128 = scmp.eq.s32.totalorder %s25, 0
      %p129 = por %p127, %p128
      %p130 = scmp.ne.s32.totalorder %s122, %s124
      %p131 = scmp.eq.s32.totalorder %s30, 1
      %p132 = por %p130, %p131
      %p133 = scmp.ne.s32.totalorder %s124, %s125
      %p134 = scmp.eq.s32.totalorder %s30, 0
      %p135 = por %p133, %p134
      %p136 = scmp.ne.s32.totalorder %s124, %s125
      %p137 = scmp.eq.s32.totalorder %s31, 1
      %p138 = por %p136, %p137
      %p140 = scmp.ne.s32.totalorder %s125, %s139
      %p141 = scmp.eq.s32.totalorder %s31, 0
      %p142 = por %p140, %p141
      %s144 = sadd.s32 %s143, 1
      %p147 = scmp.eq.s32.totalorder %s25, 1
      %p148 = scmp.ne.s32.totalorder %s143, %s145
      %p149 = scmp.eq.s32.totalorder %s25, 0
      %p150 = por %p148, %p149
      %p151 = scmp.ne.s32.totalorder %s143, %s145
      %p152 = scmp.eq.s32.totalorder %s30, 1
      %p153 = por %p151, %p152
      %p154 = scmp.ne.s32.totalorder %s145, %s146
      %p155 = scmp.eq.s32.totalorder %s30, 0
      %p156 = por %p154, %p155
      %p157 = scmp.ne.s32.totalorder %s145, %s146
      %p158 = scmp.eq.s32.totalorder %s31, 1
      %p159 = por %p157, %p158
      %p161 = scmp.ne.s32.totalorder %s146, %s160
      %p162 = scmp.eq.s32.totalorder %s31, 0
      %p163 = por %p161, %p162
      %s165 = sadd.s32 %s164, 1
      %p168 = scmp.eq.s32.totalorder %s25, 1
      %p169 = scmp.ne.s32.totalorder %s164, %s166
      %p170 = scmp.eq.s32.totalorder %s25, 0
      %p171 = por %p169, %p170
      %p172 = scmp.ne.s32.totalorder %s164, %s166
      %p173 = scmp.eq.s32.totalorder %s30, 1
      %p174 = por %p172, %p173
      %p175 = scmp.ne.s32.totalorder %s166, %s167
      %p176 = scmp.eq.s32.totalorder %s30, 0
      %p177 = por %p175, %p176
      %p178 = scmp.ne.s32.totalorder %s166, %s167
      %p179 = scmp.eq.s32.totalorder %s31, 1
      %p180 = por %p178, %p179
      %p182 = scmp.ne.s32.totalorder %s167, %s181
      %p183 = scmp.eq.s32.totalorder %s31, 0
      %p184 = por %p182, %p183
      %s186 = sadd.s32 %s185, 1
      %p189 = scmp.eq.s32.totalorder %s25, 1
      %p190 = scmp.ne.s32.totalorder %s185, %s187
      %p191 = scmp.eq.s32.totalorder %s25, 0
      %p192 = por %p190, %p191
      %p193 = scmp.ne.s32.totalorder %s185, %s187
      %p194 = scmp.eq.s32.totalorder %s30, 1
      %p195 = por %p193, %p194
      %p196 = scmp.ne.s32.totalorder %s187, %s188
      %p197 = scmp.eq.s32.totalorder %s30, 0
      %p198 = por %p196, %p197
      %p199 = scmp.ne.s32.totalorder %s187, %s188
      %p200 = scmp.eq.s32.totalorder %s31, 1
      %p201 = por %p199, %p200
      %p203 = scmp.ne.s32.totalorder %s188, %s202
      %p204 = scmp.eq.s32.totalorder %s31, 0
      %p205 = por %p203, %p204
      %s207 = sadd.s32 %s206, 1
      %p210 = scmp.eq.s32.totalorder %s25, 1
      %p211 = scmp.ne.s32.totalorder %s206, %s208
      %p212 = scmp.eq.s32.totalorder %s25, 0
      %p213 = por %p211, %p212
      %p214 = scmp.ne.s32.totalorder %s206, %s208
      %p215 = scmp.eq.s32.totalorder %s30, 1
      %p216 = por %p214, %p215
      %p217 = scmp.ne.s32.totalorder %s208, %s209
      %p218 = scmp.eq.s32.totalorder %s30, 0
      %p219 = por %p217, %p218
      %p220 = scmp.ne.s32.totalorder %s208, %s209
      %p221 = scmp.eq.s32.totalorder %s31, 1
      %p222 = por %p220, %p221
      %p224 = scmp.ne.s32.totalorder %s209, %s223
      %p225 = scmp.eq.s32.totalorder %s31, 0
      %p226 = por %p224, %p225
      %s228 = sadd.s32 %s227, 1
      %p231 = scmp.eq.s32.totalorder %s25, 1
      %p232 = scmp.ne.s32.totalorder %s227, %s229
      %p233 = scmp.eq.s32.totalorder %s25, 0
      %p234 = por %p232, %p233
      %p235 = scmp.ne.s32.totalorder %s227, %s229
      %p236 = scmp.eq.s32.totalorder %s30, 1
      %p237 = por %p235, %p236
      %p238 = scmp.ne.s32.totalorder %s229, %s230
      %p239 = scmp.eq.s32.totalorder %s30, 0
      %p240 = por %p238, %p239
      %p241 = scmp.ne.s32.totalorder %s229, %s230
      %p242 = scmp.eq.s32.totalorder %s31, 1
      %p243 = por %p241, %p242
      %p245 = scmp.ne.s32.totalorder %s230, %s244
      %p246 = scmp.eq.s32.totalorder %s31, 0
      %p247 = por %p245, %p246
      %s249 = sadd.s32 %s248, 1
      %p252 = scmp.eq.s32.totalorder %s25, 1
      %p253 = scmp.ne.s32.totalorder %s248, %s250
      %p254 = scmp.eq.s32.totalorder %s25, 0
      %p255 = por %p253, %p254
      %p256 = scmp.ne.s32.totalorder %s248, %s250
      %p257 = scmp.eq.s32.totalorder %s30, 1
      %p258 = por %p256, %p257
      %p259 = scmp.ne.s32.totalorder %s250, %s251
      %p260 = scmp.eq.s32.totalorder %s30, 0
      %p261 = por %p259, %p260
      %p262 = scmp.ne.s32.totalorder %s250, %s251
      %p263 = scmp.eq.s32.totalorder %s31, 1
      %p264 = por %p262, %p263
      %p266 = scmp.ne.s32.totalorder %s251, %s265
      %p267 = scmp.eq.s32.totalorder %s31, 0
      %p268 = por %p266, %p267
      %s270 = sadd.s32 %s269, 1
      %p273 = scmp.eq.s32.totalorder %s25, 1
      %p274 = scmp.ne.s32.totalorder %s269, %s271
      %p275 = scmp.eq.s32.totalorder %s25, 0
      %p276 = por %p274, %p275
      %p277 = scmp.ne.s32.totalorder %s269, %s271
      %p278 = scmp.eq.s32.totalorder %s30, 1
      %p279 = por %p277, %p278
      %p280 = scmp.ne.s32.totalorder %s271, %s272
      %p281 = scmp.eq.s32.totalorder %s30, 0
      %p282 = por %p280, %p281
      %p283 = scmp.ne.s32.totalorder %s271, %s272
      %p284 = scmp.eq.s32.totalorder %s31, 1
      %p285 = por %p283, %p284
      %p287 = scmp.ne.s32.totalorder %s272, %s286
      %p288 = scmp.eq.s32.totalorder %s31, 0
      %p289 = por %p287, %p288
      %s291 = sadd.s32 %s290, 1
      %p294 = scmp.eq.s32.totalorder %s25, 1
      %p295 = scmp.ne.s32.totalorder %s290, %s292
      %p296 = scmp.eq.s32.totalorder %s25, 0
      %p297 = por %p295, %p296
      %p298 = scmp.ne.s32.totalorder %s290, %s292
      %p299 = scmp.eq.s32.totalorder %s30, 1
      %p300 = por %p298, %p299
      %p301 = scmp.ne.s32.totalorder %s292, %s293
      %p302 = scmp.eq.s32.totalorder %s30, 0
      %p303 = por %p301, %p302
      %p304 = scmp.ne.s32.totalorder %s292, %s293
      %p305 = scmp.eq.s32.totalorder %s31, 1
      %p306 = por %p304, %p305
      %p308 = scmp.ne.s32.totalorder %s293, %s307
      %p309 = scmp.eq.s32.totalorder %s31, 0
      %p310 = por %p308, %p309
      %s312 = sadd.s32 %s311, 1
      %p315 = scmp.eq.s32.totalorder %s25, 1
      %p316 = scmp.ne.s32.totalorder %s311, %s313
      %p317 = scmp.eq.s32.totalorder %s25, 0
      %p318 = por %p316, %p317
      %p319 = scmp.ne.s32.totalorder %s311, %s313
      %p320 = scmp.eq.s32.totalorder %s30, 1
      %p321 = por %p319, %p320
      %p322 = scmp.ne.s32.totalorder %s313, %s314
      %p323 = scmp.eq.s32.totalorder %s30, 0
      %p324 = por %p322, %p323
      %p325 = scmp.ne.s32.totalorder %s313, %s314
      %p326 = scmp.eq.s32.totalorder %s31, 1
      %p327 = por %p325, %p326
      %p329 = scmp.ne.s32.totalorder %s314, %s328
      %p330 = scmp.eq.s32.totalorder %s31, 0
      %p331 = por %p329, %p330
      %s332 = ssub.s32 %s25, %s32
      %p333 = scmp.eq.s32.totalorder %s332, 0
      %s335 = sadd.s32 %s334, 1
      %s336 = scalar_select %p333, %s334, %s335
      %p339 = pneg %p333
      %p340 = scmp.eq.s32.totalorder %s25, 1
      %p341 = por %p339, %p340
      %p342 = scmp.ne.s32.totalorder %s334, %s337
      %p343 = scmp.eq.s32.totalorder %s25, 0
      %p344 = por %p342, %p343
      %p345 = scmp.ne.s32.totalorder %s334, %s337
      %p346 = scmp.eq.s32.totalorder %s30, 1
      %p347 = por %p345, %p346
      %p348 = scmp.ne.s32.totalorder %s337, %s338
      %p349 = scmp.eq.s32.totalorder %s30, 0
      %p350 = por %p348, %p349
      %p351 = scmp.ne.s32.totalorder %s337, %s338
      %p352 = scmp.eq.s32.totalorder %s31, 1
      %p353 = por %p351, %p352
      %p355 = scmp.ne.s32.totalorder %s338, %s354
      %p356 = scmp.eq.s32.totalorder %s31, 0
      %p357 = por %p355, %p356
      %p358 = scmp.le.s32.totalorder 1, %s25
      %p359 = scmp.lt.s32.totalorder %s25, 3
      %p360 = pnand %p358, %p359
      %p361 = pneg %p360
      // Predicated region
      $region9: #{tpu_custom_call.1} parent=5 // pred_check
        _
      $region10: #{tpu_custom_call.1} parent=5 // pred_check_branch
        %363 = sbr.rel (%p360) target = $region12
      $region11: #{tpu_custom_call.1} parent=5 // pred_region
        %s364 = ssub.s32 %s25, 1
        // Predicated region
        $region13: #{tpu_custom_call.1} parent=11 // pred_check
          %p365 = pneg %p72
        $region14: #{tpu_custom_call.1} parent=11 // pred_check_branch
          %367 = sbr.rel (%p365) target = $region16
        $region15: #{tpu_custom_call.1} parent=11 // pred_region
          %369 = vsyncadd [#allocation3], 0
          %s371 = sshll.u32 %s1, 4
          %s372 = int_to_ptr.hbm [resolvable:$true] %s371
          %s373 = sshll.u32 [#allocation2], 4
          %s374 = int_to_ptr.vmem [resolvable:$true] %s373
          %376 = dma.hbm_to_vmem [thread:$0]  %s372, 128, %s374, [#allocation3]
        $region16: #{tpu_custom_call.1} parent=11 // pred_fallthru
          _
        // Predicated region
        $region17: #{tpu_custom_call.1} parent=11 // pred_check
          %p377 = pneg %p93
        $region18: #{tpu_custom_call.1} parent=11 // pred_check_branch
          %379 = sbr.rel (%p377) target = $region20
        $region19: #{tpu_custom_call.1} parent=11 // pred_region
          _
        $region20: #{tpu_custom_call.1} parent=11 // pred_fallthru
          _
        // Predicated region
        $region21: #{tpu_custom_call.1} parent=11 // pred_check
          %p380 = pneg %p114
        $region22: #{tpu_custom_call.1} parent=11 // pred_check_branch
          %382 = sbr.rel (%p380) target = $region24
        $region23: #{tpu_custom_call.1} parent=11 // pred_region
          _
        $region24: #{tpu_custom_call.1} parent=11 // pred_fallthru
          _
        // Predicated region
        $region25: #{tpu_custom_call.1} parent=11 // pred_check
          %p383 = pneg %p135
        $region26: #{tpu_custom_call.1} parent=11 // pred_check_branch
          %385 = sbr.rel (%p383) target = $region28
        $region27: #{tpu_custom_call.1} parent=11 // pred_region
          _
        $region28: #{tpu_custom_call.1} parent=11 // pred_fallthru
          _
        // Predicated region
        $region29: #{tpu_custom_call.1} parent=11 // pred_check
          %p386 = pneg %p156
        $region30: #{tpu_custom_call.1} parent=11 // pred_check_branch
          %388 = sbr.rel (%p386) target = $region32
        $region31: #{tpu_custom_call.1} parent=11 // pred_region
          _
        $region32: #{tpu_custom_call.1} parent=11 // pred_fallthru
          _
        // Predicated region
        $region33: #{tpu_custom_call.1} parent=11 // pred_check
          %p389 = pneg %p177
        $region34: #{tpu_custom_call.1} parent=11 // pred_check_branch
          %391 = sbr.rel (%p389) target = $region36
        $region35: #{tpu_custom_call.1} parent=11 // pred_region
          %393 = vsyncadd [#allocation6], 0
          %s394 = sshll.u32 %s6, 4
          %s395 = int_to_ptr.hbm [resolvable:$true] %s394
          %s396 = sshll.u32 [#allocation5], 4
          %s397 = int_to_ptr.vmem [resolvable:$true] %s396
          %402 = dma.hbm_to_vmem [thread:$0]  %s395, 256, %s397, [#allocation6], 64, 64, 4
        $region36: #{tpu_custom_call.1} parent=11 // pred_fallthru
          _
        // Predicated region
        $region37: #{tpu_custom_call.1} parent=11 // pred_check
          %p403 = pneg %p198
        $region38: #{tpu_custom_call.1} parent=11 // pred_check_branch
          %405 = sbr.rel (%p403) target = $region40
        $region39: #{tpu_custom_call.1} parent=11 // pred_region
          _
        $region40: #{tpu_custom_call.1} parent=11 // pred_fallthru
          _
        // Predicated region
        $region41: #{tpu_custom_call.1} parent=11 // pred_check
          %p406 = pneg %p219
        $region42: #{tpu_custom_call.1} parent=11 // pred_check_branch
          %408 = sbr.rel (%p406) target = $region44
        $region43: #{tpu_custom_call.1} parent=11 // pred_region
          _
        $region44: #{tpu_custom_call.1} parent=11 // pred_fallthru
          _
        // Predicated region
        $region45: #{tpu_custom_call.1} parent=11 // pred_check
          %p409 = pneg %p240
        $region46: #{tpu_custom_call.1} parent=11 // pred_check_branch
          %411 = sbr.rel (%p409) target = $region48
        $region47: #{tpu_custom_call.1} parent=11 // pred_region
          _
        $region48: #{tpu_custom_call.1} parent=11 // pred_fallthru
          _
        // Predicated region
        $region49: #{tpu_custom_call.1} parent=11 // pred_check
          %p412 = pneg %p261
        $region50: #{tpu_custom_call.1} parent=11 // pred_check_branch
          %414 = sbr.rel (%p412) target = $region52
        $region51: #{tpu_custom_call.1} parent=11 // pred_region
          _
        $region52: #{tpu_custom_call.1} parent=11 // pred_fallthru
          _
        // Predicated region
        $region53: #{tpu_custom_call.1} parent=11 // pred_check
          %p415 = pneg %p282
        $region54: #{tpu_custom_call.1} parent=11 // pred_check_branch
          %417 = sbr.rel (%p415) target = $region56
        $region55: #{tpu_custom_call.1} parent=11 // pred_region
          _
        $region56: #{tpu_custom_call.1} parent=11 // pred_fallthru
          _
        // Predicated region
        $region57: #{tpu_custom_call.1} parent=11 // pred_check
          %p418 = pneg %p303
        $region58: #{tpu_custom_call.1} parent=11 // pred_check_branch
          %420 = sbr.rel (%p418) target = $region60
        $region59: #{tpu_custom_call.1} parent=11 // pred_region
          _
        $region60: #{tpu_custom_call.1} parent=11 // pred_fallthru
          _
        // Predicated region
        $region61: #{tpu_custom_call.1} parent=11 // pred_check
          %p421 = pneg %p324
        $region62: #{tpu_custom_call.1} parent=11 // pred_check_branch
          %423 = sbr.rel (%p421) target = $region64
        $region63: #{tpu_custom_call.1} parent=11 // pred_region
          _
        $region64: #{tpu_custom_call.1} parent=11 // pred_fallthru
          _
      $region12: #{tpu_custom_call.1} parent=5 // pred_fallthru
        _
      %p424 = scmp.lt.s32.totalorder %s25, 2
      // Predicated region
      $region65: #{tpu_custom_call.1} parent=5 // pred_check
        %p425 = pneg %p424
      $region66: #{tpu_custom_call.1} parent=5 // pred_check_branch
        %427 = sbr.rel (%p425) target = $region68
      $region67: #{tpu_custom_call.1} parent=5 // pred_region
        // Predicated region
        $region69: #{tpu_custom_call.1} parent=67 // pred_check
          %p428 = pneg %p45
        $region70: #{tpu_custom_call.1} parent=67 // pred_check_branch
          %430 = sbr.rel (%p428) target = $region72
        $region71: #{tpu_custom_call.1} parent=67 // pred_region
          %s431 = smul.u32 2, %s25
          %p432 = scmp.lt.s32.totalorder %s431, 3
          %s433 = scalar_select %p432, %s431, 3
          %s434 = smul.addr %s433, 4
          %s435 = scalar_lea.vmem %s0, %s434
          %s436 = smul.u32 2, %s25
        $region72: #{tpu_custom_call.1} parent=67 // pred_fallthru
          _
      $region68: #{tpu_custom_call.1} parent=5 // pred_fallthru
        _
      %p437 = scmp.le.s32.totalorder 1, %s25
      %p438 = scmp.lt.s32.totalorder %s25, 3
      %p439 = pnand %p437, %p438
      %p440 = pneg %p439
      // Predicated region
      $region73: #{tpu_custom_call.1} parent=5 // pred_check
        _
      $region74: #{tpu_custom_call.1} parent=5 // pred_check_branch
        %442 = sbr.rel (%p439) target = $region76
      $region75: #{tpu_custom_call.1} parent=5 // pred_region
        %s443 = ssub.s32 %s25, 1
        // Predicated region
        $region77: #{tpu_custom_call.1} parent=75 // pred_check
          %p444 = pneg %p72
        $region78: #{tpu_custom_call.1} parent=75 // pred_check_branch
          %446 = sbr.rel (%p444) target = $region80
        $region79: #{tpu_custom_call.1} parent=75 // pred_region
          %448 = dma.done [#allocation3], 128
        $region80: #{tpu_custom_call.1} parent=75 // pred_fallthru
          _
        // Predicated region
        $region81: #{tpu_custom_call.1} parent=75 // pred_check
          %p449 = pneg %p177
        $region82: #{tpu_custom_call.1} parent=75 // pred_check_branch
          %451 = sbr.rel (%p449) target = $region84
        $region83: #{tpu_custom_call.1} parent=75 // pred_region
          %453 = dma.done [#allocation6], 256
        $region84: #{tpu_custom_call.1} parent=75 // pred_fallthru
          _
        %s454 = smul.u32 2, %s30
        %p455 = scmp.lt.s32.totalorder %s454, 3
        %s456 = scalar_select %p455, %s454, 3
        %s457 = smul.addr %s456, 4
        %s458 = scalar_lea.vmem %s0, %s457
        %p459 = pneg %p51
        %p460 = pneg %p48
        %p461 = pneg %p72
        %p462 = pneg %p69
        %p463 = pneg %p93
        %p464 = pneg %p90
        %p465 = pneg %p114
        %p466 = pneg %p111
        %p467 = pneg %p135
        %p468 = pneg %p132
        %p469 = pneg %p156
        %p470 = pneg %p153
        %p471 = pneg %p177
        %p472 = pneg %p174
        %p473 = pneg %p198
        %p474 = pneg %p195
        %p475 = pneg %p219
        %p476 = pneg %p216
        %p477 = pneg %p240
        %p478 = pneg %p237
        %p479 = pneg %p261
        %p480 = pneg %p258
        %p481 = pneg %p282
        %p482 = pneg %p279
        %p483 = pneg %p303
        %p484 = pneg %p300
        %p485 = pneg %p324
        %p486 = pneg %p321
        %p487 = pneg %p350
        %p488 = pneg %p347
        %s489 = sand.u32 %s337, 1
        %s490 = scalar_lea.sflag [#allocation4], %s489
        %s491 = sand.u32 %s337, 1
        %s492 = smul.addr %s491, 8
        %s493 = scalar_lea.vmem [#allocation7], %s492
        %s494 = smul.u32 2, %s30
        %p495 = scmp.lt.s32.totalorder %s494, 3
        %s496 = scalar_select %p495, %s494, 3
        %s497 = smul.addr %s496, 4
        %s498 = scalar_lea.vmem %s0, %s497
        %s499 = smul.u32 2, %s30
        %s500 = smul.u32 2, %s30
        %v502 = vld [vmem:[%s498] sm:$0xf]
        %v503 = vld [vmem:[%s498 + $0x4] sm:$0xf]
        %v504 = vunpack.c.l.bf16 %v502
        %v505 = vunpack.c.l.bf16 %v503
        %v506 = vmul.f32 %v504, 5.656854
        %v507 = vmul.f32 %v505, 5.656854
        %v508 = vld [vmem:[#allocation2] sm:$0xff]
        %v509 = vadd.f32 %v506, %v508
        %v510 = vadd.f32 %v507, %v508
        %v511 = vpack.c.bf16 %v510, %v509
        %v512 = vld [vmem:[%s2] sm:$0xf]
        %v513 = vld [vmem:[%s2 + $0x4] sm:$0xf]
        %v514 = vld [vmem:[%s2 + $0x8] sm:$0xf]
        %v515 = vld [vmem:[%s2 + $0xc] sm:$0xf]
        %v516 = vld [vmem:[%s3] sm:$0x1]
        %v518 = vperm.slane %v516, 0
        %v524 = vunpack.c.l.b16 %v512
        %v525 = vunpack.c.l.b16 %v513
        %v526 = vunpack.c.l.b16 %v514
        %v527 = vunpack.c.l.b16 %v515
        %v528 = vpack.c.b16 %v525, %v524
        %v529 = vpack.c.b16 %v527, %v526
        %vm532 = vcmask 261120
        %v534 = vsel %vm532, %v511, 0
        %536 = vmatpush.bf16.msra.mxu0 0
        %537 = vmatpush.bf16.msra.mxu0 0
        %538 = vmatpush.bf16.msra.mxu0 0
        %539 = vmatpush.bf16.msra.mxu0 0
        %540 = vmatpush.bf16.msra.mxu0 0
        %541 = vmatpush.bf16.msra.mxu0 0
        %542 = vmatpush.bf16.msra.mxu0 %v529
        %543 = vmatpush.bf16.msra.mxu0 %v528
        %544 = vmatmul.bf16.gmra.mxu0 %v534
        %v545 = vpop.f32.mrf.mxu0
        %v546 = vadd.f32 %v518, %v545
        %v547 = vpop.f32.mrf.mxu0
        %v548 = vadd.f32 %v518, %v547
        %549 = vdwg.mxu0
        %552 = vrot.lane.b32.xlu0 %v546, 112
        %v553 = vpop.permute.xlu0 %552
        %554 = vrot.lane.b32.xlu0 %v548, 112
        %v555 = vpop.permute.xlu0 %554
        %v558 = vmul.f32 %v546, 0.25
        %v559 = vmul.f32 %v548, 0.25
        %v560 = vmul.f32 %v553, 0.25
        %v561 = vmul.f32 %v555, 0.25
        %v562 = vpack.c.bf16 %v558, %v558
        %v563 = vpack.c.bf16 %v559, %v559
        %v564 = vpack.c.bf16 %v560, %v560
        %v565 = vpack.c.bf16 %v561, %v561
        %v566 = vpack.c.bf16 %v546, %v546
        %v567 = vpack.c.bf16 %v548, %v548
        %v568 = vpack.c.bf16 %v553, %v553
        %v569 = vpack.c.bf16 %v555, %v555
        %v570 = vlaneseq
        %v571 = vshrl.u32 %v570, 7
        %v572 = vlaneseq
        %v573 = vand.u32 %v572, 127
        %v575 = vunpack.c.l.b16 %v566
        %v576 = vpack.c.b16 %v575, %v575
        %577 = vrot.lane.b32.xlu0 %v576, 96
        %v578 = vpop.permute.xlu0 %577
        %vm579 = vcmask 130048
        %v581 = vsel %vm579, %v562, 0
        %v584 = vsel %vm579, %v578, 0
        %586 = vmatpush.bf16.xpose.msra.mxu0 0
        %587 = vmatpush.bf16.xpose.msra.mxu0 0
        %588 = vmatpush.bf16.xpose.msra.mxu0 0
        %589 = vmatpush.bf16.xpose.msra.mxu0 0
        %590 = vmatpush.bf16.xpose.msra.mxu0 0
        %591 = vmatpush.bf16.xpose.msra.mxu0 0
        %592 = vmatpush.bf16.xpose.msra.mxu0 0
        %593 = vmatpush.bf16.xpose.msra.mxu0 %v584
        %594 = vmatmul.bf16.gmra.mxu0 %v581
        %v595 = vpop.f32.mrf.mxu0
        %v596 = vadd.f32 0.0, %v595
        %v597 = vpop.f32.mrf.mxu0
        %598 = vdwg.mxu0
        %v600 = vunpack.c.l.b16 %v567
        %v601 = vpack.c.b16 %v600, %v600
        %602 = vrot.lane.b32.xlu0 %v601, 96
        %v603 = vpop.permute.xlu0 %602
        %v605 = vsel %vm579, %v563, 0
        %v608 = vsel %vm579, %v603, 0
        %610 = vmatpush.bf16.xpose.msra.mxu0 0
        %611 = vmatpush.bf16.xpose.msra.mxu0 0
        %612 = vmatpush.bf16.xpose.msra.mxu0 0
        %613 = vmatpush.bf16.xpose.msra.mxu0 0
        %614 = vmatpush.bf16.xpose.msra.mxu0 0
        %615 = vmatpush.bf16.xpose.msra.mxu0 0
        %616 = vmatpush.bf16.xpose.msra.mxu0 0
        %617 = vmatpush.bf16.xpose.msra.mxu0 %v608
        %618 = vmatmul.bf16.gmra.mxu0 %v605
        %v619 = vpop.f32.mrf.mxu0
        %v620 = vadd.f32 0.0, %v619
        %v621 = vpop.f32.mrf.mxu0
        %622 = vdwg.mxu0
        %v624 = vunpack.c.l.b16 %v568
        %v625 = vpack.c.b16 %v624, %v624
        %626 = vrot.lane.b32.xlu0 %v625, 96
        %v627 = vpop.permute.xlu0 %626
        %v629 = vsel %vm579, %v564, 0
        %v632 = vsel %vm579, %v627, 0
        %634 = vmatpush.bf16.xpose.msra.mxu0 0
        %635 = vmatpush.bf16.xpose.msra.mxu0 0
        %636 = vmatpush.bf16.xpose.msra.mxu0 0
        %637 = vmatpush.bf16.xpose.msra.mxu0 0
        %638 = vmatpush.bf16.xpose.msra.mxu0 0
        %639 = vmatpush.bf16.xpose.msra.mxu0 0
        %640 = vmatpush.bf16.xpose.msra.mxu0 0
        %641 = vmatpush.bf16.xpose.msra.mxu0 %v632
        %642 = vmatmul.bf16.gmra.mxu0 %v629
        %v643 = vpop.f32.mrf.mxu0
        %v644 = vadd.f32 0.0, %v643
        %v645 = vpop.f32.mrf.mxu0
        %646 = vdwg.mxu0
        %v648 = vunpack.c.l.b16 %v569
        %v649 = vpack.c.b16 %v648, %v648
        %650 = vrot.lane.b32.xlu0 %v649, 96
        %v651 = vpop.permute.xlu0 %650
        %v653 = vsel %vm579, %v565, 0
        %v656 = vsel %vm579, %v651, 0
        %658 = vmatpush.bf16.xpose.msra.mxu0 0
        %659 = vmatpush.bf16.xpose.msra.mxu0 0
        %660 = vmatpush.bf16.xpose.msra.mxu0 0
        %661 = vmatpush.bf16.xpose.msra.mxu0 0
        %662 = vmatpush.bf16.xpose.msra.mxu0 0
        %663 = vmatpush.bf16.xpose.msra.mxu0 0
        %664 = vmatpush.bf16.xpose.msra.mxu0 0
        %665 = vmatpush.bf16.xpose.msra.mxu0 %v656
        %666 = vmatmul.bf16.gmra.mxu0 %v653
        %v667 = vpop.f32.mrf.mxu0
        %v668 = vadd.f32 0.0, %v667
        %v669 = vpop.f32.mrf.mxu0
        %670 = vdwg.mxu0
        %vm671 = vcmp.le.s32.totalorder %v573, %v571
        %v672 = vsel %vm671, 1, 0
        %vm673 = vcmp.eq.s32.totalorder %v672, 1
        %v674 = vsel %vm673, %v596, -1e+30
        %v675 = vsel %vm673, %v620, -1e+30
        %v676 = vsel %vm673, %v644, -1e+30
        %v677 = vsel %vm673, %v668, -1e+30
        %vm678 = vcmask 64512
        %v679 = vsel %vm678, %v674, -inf
        %680 = vmax.xlane.f32.xlu0 %v679
        %v681 = vpop.xlane.xlu0 %680
        %v682 = vsel %vm678, %v675, -inf
        %683 = vmax.xlane.f32.xlu0 %v682
        %v684 = vpop.xlane.xlu0 %683
        %v685 = vsel %vm678, %v676, -inf
        %686 = vmax.xlane.f32.xlu0 %v685
        %v687 = vpop.xlane.xlu0 %686
        %v688 = vsel %vm678, %v677, -inf
        %689 = vmax.xlane.f32.xlu0 %v688
        %v690 = vpop.xlane.xlu0 %689
        %v691 = vmax.f32 %v681, -1e+30
        %v692 = vmax.f32 %v684, -1e+30
        %v693 = vmax.f32 %v687, -1e+30
        %v694 = vmax.f32 %v690, -1e+30
        %v695 = vsub.f32 -1e+30, %v691
        %v696 = vsub.f32 -1e+30, %v692
        %v697 = vsub.f32 -1e+30, %v693
        %v698 = vsub.f32 -1e+30, %v694
        %v699 = vmul.f32 %v695, 1.442695
        %v700 = vpow.pop %v699
        %v701 = vmul.f32 %v696, 1.442695
        %v702 = vpow.pop %v701
        %v703 = vmul.f32 %v697, 1.442695
        %v704 = vpow.pop %v703
        %v705 = vmul.f32 %v698, 1.442695
        %v706 = vpow.pop %v705
        %v707 = vsub.f32 %v674, %v691
        %v708 = vsub.f32 %v675, %v692
        %v709 = vsub.f32 %v676, %v693
        %v710 = vsub.f32 %v677, %v694
        %v711 = vmul.f32 %v707, 1.442695
        %v712 = vpow.pop %v711
        %v713 = vmul.f32 %v708, 1.442695
        %v714 = vpow.pop %v713
        %v715 = vmul.f32 %v709, 1.442695
        %v716 = vpow.pop %v715
        %v717 = vmul.f32 %v710, 1.442695
        %v718 = vpow.pop %v717
        %v719 = vmul.f32 %v700, 0.0
        %v720 = vmul.f32 %v702, 0.0
        %v721 = vmul.f32 %v704, 0.0
        %v722 = vmul.f32 %v706, 0.0
        %v723 = vsel %vm678, %v712, 0.0
        %724 = vadd.xlane.f32.xlu0 %v723
        %v725 = vpop.xlane.xlu0 %724
        %v726 = vsel %vm678, %v714, 0.0
        %727 = vadd.xlane.f32.xlu0 %v726
        %v728 = vpop.xlane.xlu0 %727
        %v729 = vsel %vm678, %v716, 0.0
        %730 = vadd.xlane.f32.xlu0 %v729
        %v731 = vpop.xlane.xlu0 %730
        %v732 = vsel %vm678, %v718, 0.0
        %733 = vadd.xlane.f32.xlu0 %v732
        %v734 = vpop.xlane.xlu0 %733
        %v735 = vadd.f32 %v719, %v725
        %v736 = vadd.f32 %v720, %v728
        %v737 = vadd.f32 %v721, %v731
        %v738 = vadd.f32 %v722, %v734
        %v739 = vpack.c.bf16 %v712, %v712
        %v740 = vpack.c.bf16 %v714, %v714
        %v741 = vpack.c.bf16 %v716, %v716
        %v742 = vpack.c.bf16 %v718, %v718
        %743 = vrot.lane.b32.xlu0 %v576, 64
        %v744 = vpop.permute.xlu0 %743
        %v746 = vsel %vm678, %v739, 0
        %vm748 = vcmask 1043456
        %v750 = vsel %vm748, %v744, 0
        %752 = vmatpush.bf16.msra.mxu0 0
        %753 = vmatpush.bf16.msra.mxu0 0
        %754 = vmatpush.bf16.msra.mxu0 0
        %755 = vmatpush.bf16.msra.mxu0 0
        %756 = vmatpush.bf16.msra.mxu0 0
        %757 = vmatpush.bf16.msra.mxu0 0
        %758 = vmatpush.bf16.msra.mxu0 0
        %759 = vmatpush.bf16.msra.mxu0 %v750
        %760 = vmatmul.bf16.gmra.mxu0 %v746
        %v761 = vpop.f32.mrf.mxu0
        %v762 = vadd.f32 0.0, %v761
        %v763 = vpop.f32.mrf.mxu0
        %764 = vdwg.mxu0
        %765 = vrot.lane.b32.xlu0 %v601, 64
        %v766 = vpop.permute.xlu0 %765
        %v768 = vsel %vm678, %v740, 0
        %v771 = vsel %vm748, %v766, 0
        %773 = vmatpush.bf16.msra.mxu0 0
        %774 = vmatpush.bf16.msra.mxu0 0
        %775 = vmatpush.bf16.msra.mxu0 0
        %776 = vmatpush.bf16.msra.mxu0 0
        %777 = vmatpush.bf16.msra.mxu0 0
        %778 = vmatpush.bf16.msra.mxu0 0
        %779 = vmatpush.bf16.msra.mxu0 0
        %780 = vmatpush.bf16.msra.mxu0 %v771
        %781 = vmatmul.bf16.gmra.mxu0 %v768
        %v782 = vpop.f32.mrf.mxu0
        %v783 = vadd.f32 0.0, %v782
        %v784 = vpop.f32.mrf.mxu0
        %785 = vdwg.mxu0
        %786 = vrot.lane.b32.xlu0 %v625, 64
        %v787 = vpop.permute.xlu0 %786
        %v789 = vsel %vm678, %v741, 0
        %v792 = vsel %vm748, %v787, 0
        %794 = vmatpush.bf16.msra.mxu0 0
        %795 = vmatpush.bf16.msra.mxu0 0
        %796 = vmatpush.bf16.msra.mxu0 0
        %797 = vmatpush.bf16.msra.mxu0 0
        %798 = vmatpush.bf16.msra.mxu0 0
        %799 = vmatpush.bf16.msra.mxu0 0
        %800 = vmatpush.bf16.msra.mxu0 0
        %801 = vmatpush.bf16.msra.mxu0 %v792
        %802 = vmatmul.bf16.gmra.mxu0 %v789
        %v803 = vpop.f32.mrf.mxu0
        %v804 = vadd.f32 0.0, %v803
        %v805 = vpop.f32.mrf.mxu0
        %806 = vdwg.mxu0
        %807 = vrot.lane.b32.xlu0 %v649, 64
        %v808 = vpop.permute.xlu0 %807
        %v810 = vsel %vm678, %v742, 0
        %v813 = vsel %vm748, %v808, 0
        %815 = vmatpush.bf16.msra.mxu0 0
        %816 = vmatpush.bf16.msra.mxu0 0
        %817 = vmatpush.bf16.msra.mxu0 0
        %818 = vmatpush.bf16.msra.mxu0 0
        %819 = vmatpush.bf16.msra.mxu0 0
        %820 = vmatpush.bf16.msra.mxu0 0
        %821 = vmatpush.bf16.msra.mxu0 0
        %822 = vmatpush.bf16.msra.mxu0 %v813
        %823 = vmatmul.bf16.gmra.mxu0 %v810
        %v824 = vpop.f32.mrf.mxu0
        %v825 = vadd.f32 0.0, %v824
        %v826 = vpop.f32.mrf.mxu0
        %827 = vdwg.mxu0
        %v828 = vadd.f32 %v719, %v762
        %v829 = vadd.f32 %v720, %v783
        %v830 = vadd.f32 %v721, %v804
        %v831 = vadd.f32 %v722, %v825
        %v832 = vrcp.pop %v735
        %v833 = vrcp.pop %v736
        %v834 = vrcp.pop %v737
        %v835 = vrcp.pop %v738
        %v836 = vmul.f32 %v828, %v832
        %v837 = vmul.f32 %v829, %v833
        %v838 = vmul.f32 %v830, %v834
        %v839 = vmul.f32 %v831, %v835
        %842 = vrot.lane.b32.xlu0 %v838, 16
        %v843 = vpop.permute.xlu0 %842
        %844 = vrot.lane.b32.xlu0 %v839, 16
        %v845 = vpop.permute.xlu0 %844
        %v848 = vsel %vm579, %v836, %v843
        %v849 = vsel %vm579, %v837, %v845
        %v850 = vpack.c.bf16 %v849, %v848
        %v851 = vld [vmem:[%s4] sm:$0xf]
        %v852 = vld [vmem:[%s4 + $0x4] sm:$0xf]
        %v853 = vld [vmem:[%s4 + $0x8] sm:$0xf]
        %v854 = vld [vmem:[%s4 + $0xc] sm:$0xf]
        %v855 = vld [vmem:[%s5] sm:$0x1]
        %v857 = vperm.slane %v855, 0
        %v863 = vunpack.c.l.b16 %v851
        %v864 = vunpack.c.l.b16 %v852
        %v865 = vunpack.c.l.b16 %v853
        %v866 = vunpack.c.l.b16 %v854
        %v867 = vpack.c.b16 %v864, %v863
        %v868 = vpack.c.b16 %v866, %v865
        %v872 = vsel %vm532, %v850, 0
        %874 = vmatpush.bf16.msra.mxu0 0
        %875 = vmatpush.bf16.msra.mxu0 0
        %876 = vmatpush.bf16.msra.mxu0 0
        %877 = vmatpush.bf16.msra.mxu0 0
        %878 = vmatpush.bf16.msra.mxu0 0
        %879 = vmatpush.bf16.msra.mxu0 0
        %880 = vmatpush.bf16.msra.mxu0 %v868
        %881 = vmatpush.bf16.msra.mxu0 %v867
        %882 = vmatmul.bf16.gmra.mxu0 %v872
        %v883 = vpop.f32.mrf.mxu0
        %v884 = vadd.f32 %v857, %v883
        %v885 = vpop.f32.mrf.mxu0
        %v886 = vadd.f32 %v857, %v885
        %887 = vdwg.mxu0
        %v888 = vadd.f32 %v509, %v884
        %v889 = vadd.f32 %v510, %v886
        %v890 = vsel %vm532, %v888, 0.0
        %891 = vadd.xlane.f32.xlu0 %v890
        %v892 = vpop.xlane.xlu0 %891
        %v893 = vsel %vm532, %v889, 0.0
        %894 = vadd.xlane.f32.xlu0 %v893
        %v895 = vpop.xlane.xlu0 %894
        %v896 = vrcp.pop 32.0
        %v897 = vmul.f32 32.0, %v896
        %v898 = vsub.f32 1.0, %v897
        %v899 = vmul.f32 %v896, %v898
        %v900 = vadd.f32 %v896, %v899
        %vm901 = vweird.f32 %v896
        %v902 = vsel %vm901, %v896, %v900
        %v903 = vmul.f32 %v892, %v902
        %v904 = vmul.f32 %v895, %v902
        %v905 = vsub.f32 %v888, %v903
        %v906 = vsub.f32 %v889, %v904
        %v907 = vmul.f32 %v905, %v905
        %v908 = vmul.f32 %v906, %v906
        %v909 = vsel %vm532, %v907, 0.0
        %910 = vadd.xlane.f32.xlu0 %v909
        %v911 = vpop.xlane.xlu0 %910
        %v912 = vsel %vm532, %v908, 0.0
        %913 = vadd.xlane.f32.xlu0 %v912
        %v914 = vpop.xlane.xlu0 %913
        %v915 = vmul.f32 %v911, %v902
        %v916 = vmul.f32 %v914, %v902
        %v917 = vadd.f32 %v915, 1e-05
        %v918 = vadd.f32 %v916, 1e-05
        %v919 = vrsqrt.pop %v917
        %v920 = vmul.f32 %v919, %v917
        %v921 = vmul.f32 %v920, %v919
        %v922 = vmul.f32 0.5, %v921
        %v923 = vsub.f32 1.5, %v922
        %v924 = vmul.f32 %v919, %v923
        %vm925 = vweird.f32 %v917
        %vm926 = vweird.f32 %v919
        %vm927 = vmor %vm925, %vm926
        %v928 = vsel %vm927, %v919, %v924
        %v929 = vrsqrt.pop %v918
        %v930 = vmul.f32 %v929, %v918
        %v931 = vmul.f32 %v930, %v929
        %v932 = vmul.f32 0.5, %v931
        %v933 = vsub.f32 1.5, %v932
        %v934 = vmul.f32 %v929, %v933
        %vm935 = vweird.f32 %v918
        %vm936 = vweird.f32 %v929
        %vm937 = vmor %vm935, %vm936
        %v938 = vsel %vm937, %v929, %v934
        %v939 = vmul.f32 %v905, %v928
        %v940 = vmul.f32 %v906, %v938
        %v941 = vld [vmem:[%s10] sm:$0x1]
        %v943 = vperm.slane %v941, 0
        %v945 = vmul.f32 %v939, %v943
        %v946 = vmul.f32 %v940, %v943
        %v947 = vld [vmem:[%s11] sm:$0x1]
        %v949 = vperm.slane %v947, 0
        %v951 = vadd.f32 %v945, %v949
        %v952 = vadd.f32 %v946, %v949
        %v953 = vpack.c.bf16 %v952, %v951
        %v954 = vld [vmem:[#allocation5] sm:$0xf]
        %v955 = vld [vmem:[#allocation5 + $0x4] sm:$0xf]
        %v956 = vld [vmem:[#allocation5 + $0x8] sm:$0xf]
        %v957 = vld [vmem:[#allocation5 + $0xc] sm:$0xf]
        %v958 = vld [vmem:[%s7] sm:$0x1]
        %v960 = vperm.slane %v958, 0
        %v966 = vunpack.c.l.b16 %v954
        %v967 = vunpack.c.l.b16 %v955
        %v968 = vunpack.c.l.b16 %v956
        %v969 = vunpack.c.l.b16 %v957
        %v970 = vpack.c.b16 %v967, %v966
        %v971 = vpack.c.b16 %v969, %v968
        %v975 = vsel %vm532, %v953, 0
        %977 = vmatpush.bf16.msra.mxu0 0
        %978 = vmatpush.bf16.msra.mxu0 0
        %979 = vmatpush.bf16.msra.mxu0 0
        %980 = vmatpush.bf16.msra.mxu0 0
        %981 = vmatpush.bf16.msra.mxu0 0
        %982 = vmatpush.bf16.msra.mxu0 0
        %983 = vmatpush.bf16.msra.mxu0 %v971
        %984 = vmatpush.bf16.msra.mxu0 %v970
        %985 = vmatmul.bf16.gmra.mxu0 %v975
        %v986 = vpop.f32.mrf.mxu0
        %v987 = vadd.f32 %v960, %v986
        %v988 = vpop.f32.mrf.mxu0
        %v989 = vadd.f32 %v960, %v988
        %990 = vdwg.mxu0
        %v991 = vmax.f32 %v987, 0.0
        %v992 = vmax.f32 %v989, 0.0
        %v993 = vpack.c.bf16 %v992, %v991
        %v994 = vld [vmem:[%s8] sm:$0xf]
        %v995 = vld [vmem:[%s8 + $0x4] sm:$0xf]
        %v996 = vld [vmem:[%s8 + $0x8] sm:$0xf]
        %v997 = vld [vmem:[%s8 + $0xc] sm:$0xf]
        %v998 = vld [vmem:[%s8 + $0x10] sm:$0xf]
        %v999 = vld [vmem:[%s8 + $0x14] sm:$0xf]
        %v1000 = vld [vmem:[%s8 + $0x18] sm:$0xf]
        %v1001 = vld [vmem:[%s8 + $0x1c] sm:$0xf]
        %v1002 = vld [vmem:[%s9] sm:$0x1]
        %v1004 = vperm.slane %v1002, 0
        %v1014 = vunpack.c.l.b16 %v994
        %v1015 = vunpack.c.l.b16 %v995
        %v1016 = vunpack.c.l.b16 %v996
        %v1017 = vunpack.c.l.b16 %v997
        %v1018 = vunpack.c.l.b16 %v998
        %v1019 = vunpack.c.l.b16 %v999
        %v1020 = vunpack.c.l.b16 %v1000
        %v1021 = vunpack.c.l.b16 %v1001
        %v1022 = vpack.c.b16 %v1015, %v1014
        %v1023 = vpack.c.b16 %v1017, %v1016
        %v1024 = vpack.c.b16 %v1019, %v1018
        %v1025 = vpack.c.b16 %v1021, %v1020
        %vm1030 = vcmask 523264
        %v1032 = vsel %vm1030, %v993, 0
        %1034 = vmatpush.bf16.msra.mxu0 0
        %1035 = vmatpush.bf16.msra.mxu0 0
        %1036 = vmatpush.bf16.msra.mxu0 0
        %1037 = vmatpush.bf16.msra.mxu0 0
        %1038 = vmatpush.bf16.msra.mxu0 %v1025
        %1039 = vmatpush.bf16.msra.mxu0 %v1024
        %1040 = vmatpush.bf16.msra.mxu0 %v1023
        %1041 = vmatpush.bf16.msra.mxu0 %v1022
        %1042 = vmatmul.bf16.gmra.mxu0 %v1032
        %v1043 = vpop.f32.mrf.mxu0
        %v1044 = vadd.f32 %v1004, %v1043
        %v1045 = vpop.f32.mrf.mxu0
        %v1046 = vadd.f32 %v1004, %v1045
        %1047 = vdwg.mxu0
        %v1048 = vadd.f32 %v951, %v1044
        %v1049 = vadd.f32 %v952, %v1046
        %v1050 = vsel %vm532, %v1048, 0.0
        %1051 = vadd.xlane.f32.xlu0 %v1050
        %v1052 = vpop.xlane.xlu0 %1051
        %v1053 = vsel %vm532, %v1049, 0.0
        %1054 = vadd.xlane.f32.xlu0 %v1053
        %v1055 = vpop.xlane.xlu0 %1054
        %v1056 = vmul.f32 %v1052, %v902
        %v1057 = vmul.f32 %v1055, %v902
        %v1058 = vsub.f32 %v1048, %v1056
        %v1059 = vsub.f32 %v1049, %v1057
        %v1060 = vmul.f32 %v1058, %v1058
        %v1061 = vmul.f32 %v1059, %v1059
        %v1062 = vsel %vm532, %v1060, 0.0
        %1063 = vadd.xlane.f32.xlu0 %v1062
        %v1064 = vpop.xlane.xlu0 %1063
        %v1065 = vsel %vm532, %v1061, 0.0
        %1066 = vadd.xlane.f32.xlu0 %v1065
        %v1067 = vpop.xlane.xlu0 %1066
        %v1068 = vmul.f32 %v1064, %v902
        %v1069 = vmul.f32 %v1067, %v902
        %v1070 = vadd.f32 %v1068, 1e-05
        %v1071 = vadd.f32 %v1069, 1e-05
        %v1072 = vrsqrt.pop %v1070
        %v1073 = vmul.f32 %v1072, %v1070
        %v1074 = vmul.f32 %v1073, %v1072
        %v1075 = vmul.f32 0.5, %v1074
        %v1076 = vsub.f32 1.5, %v1075
        %v1077 = vmul.f32 %v1072, %v1076
        %vm1078 = vweird.f32 %v1070
        %vm1079 = vweird.f32 %v1072
        %vm1080 = vmor %vm1078, %vm1079
        %v1081 = vsel %vm1080, %v1072, %v1077
        %v1082 = vrsqrt.pop %v1071
        %v1083 = vmul.f32 %v1082, %v1071
        %v1084 = vmul.f32 %v1083, %v1082
        %v1085 = vmul.f32 0.5, %v1084
        %v1086 = vsub.f32 1.5, %v1085
        %v1087 = vmul.f32 %v1082, %v1086
        %vm1088 = vweird.f32 %v1071
        %vm1089 = vweird.f32 %v1082
        %vm1090 = vmor %vm1088, %vm1089
        %v1091 = vsel %vm1090, %v1082, %v1087
        %v1092 = vmul.f32 %v1058, %v1081
        %v1093 = vmul.f32 %v1059, %v1091
        %v1094 = vld [vmem:[%s12] sm:$0x1]
        %v1096 = vperm.slane %v1094, 0
        %v1098 = vmul.f32 %v1092, %v1096
        %v1099 = vmul.f32 %v1093, %v1096
        %v1100 = vld [vmem:[%s13] sm:$0x1]
        %v1102 = vperm.slane %v1100, 0
        %v1104 = vadd.f32 %v1098, %v1102
        %v1105 = vadd.f32 %v1099, %v1102
        %v1106 = vpack.c.bf16 %v1104, %v1104
        %v1107 = vpack.c.bf16 %v1105, %v1105
        %vm1108 = vcmask 257024
        %1109 = vst.msk [vmem:[%s493] sm:$0xf] %vm1108, %v1106
        %1110 = vst.msk [vmem:[%s493 + $0x4] sm:$0xf] %vm1108, %v1107
        %s1111 = sand.u32 %s337, 1
        %s1112 = scalar_lea.sflag [#allocation4], %s1111
        %s1113 = sand.u32 %s337, 1
        %s1114 = smul.addr %s1113, 8
        %s1115 = scalar_lea.vmem [#allocation7], %s1114
        // Predicated region
        $region85: #{tpu_custom_call.1} parent=75 // pred_check
          %p1116 = pneg %p347
        $region86: #{tpu_custom_call.1} parent=75 // pred_check_branch
          %1118 = sbr.rel (%p1116) target = $region88
        $region87: #{tpu_custom_call.1} parent=75 // pred_region
          %s1119 = smul.u32 2, %s30
          %1121 = vsyncadd %s1112, 0
          %s1122 = smul.addr %s1119, 4
          %s1123 = scalar_lea.hbm %s14, %s1122
          %s1124 = sshll.u32 %s1115, 4
          %s1125 = int_to_ptr.vmem [resolvable:$true] %s1124
          %s1126 = sshll.u32 %s1123, 4
          %s1127 = int_to_ptr.hbm [resolvable:$true] %s1126
          %1132 = dma.vmem_to_hbm [thread:$0]  %s1125, 128, %s1127, %s1112, 64, 64, 4
        $region88: #{tpu_custom_call.1} parent=75 // pred_fallthru
          _
      $region76: #{tpu_custom_call.1} parent=5 // pred_fallthru
        _
      %p1133 = scmp.le.s32.totalorder 2, %s25
      // Predicated region
      $region89: #{tpu_custom_call.1} parent=5 // pred_check
        %p1134 = pneg %p1133
      $region90: #{tpu_custom_call.1} parent=5 // pred_check_branch
        %1136 = sbr.rel (%p1134) target = $region92
      $region91: #{tpu_custom_call.1} parent=5 // pred_region
        %s1137 = ssub.s32 %s25, 2
        // Predicated region
        $region93: #{tpu_custom_call.1} parent=91 // pred_check
          %p1138 = pneg %p353
        $region94: #{tpu_custom_call.1} parent=91 // pred_check_branch
          %1140 = sbr.rel (%p1138) target = $region96
        $region95: #{tpu_custom_call.1} parent=91 // pred_region
          %s1141 = sand.u32 %s338, 1
          %s1142 = scalar_lea.sflag [#allocation4], %s1141
          %s1143 = sand.u32 %s338, 1
          %s1144 = smul.addr %s1143, 8
          %s1145 = scalar_lea.vmem [#allocation7], %s1144
          %1147 = dma.done %s1142, 128
        $region96: #{tpu_custom_call.1} parent=91 // pred_fallthru
          _
      $region92: #{tpu_custom_call.1} parent=5 // pred_fallthru
        _
    $region6: #{tpu_custom_call.1} parent=1 // loop_footer
      %s29 = sadd.s32 1, %s25
    $region7: #{tpu_custom_call.1} parent=1 // loop_footer_branch
      %24 = sbr.rel target = $region3
    $region8: #{tpu_custom_call.1} parent=1 // loop_exit
      _
    %1148 = vsyncpa [#allocation3], 1
    %s1149 = scalar_lea.sflag [#allocation3], 1
    %1150 = vsyncpa %s1149, 1
    %1151 = vsyncpa [#allocation6], 1
    %1152 = vsyncpa [#allocation4], 1
    %s1153 = scalar_lea.sflag [#allocation4], 1
    %1154 = vsyncpa %s1153, 1

</llo_original>
